<compile_context>
chip_gen: v7x
topology: tpu7x:2x2x1
jax: 0.10.0
libtpu: 0.0.40
codegen_flags: <defaults>
</compile_context>

<pallas_src>
import math
from functools import partial

import jax
import jax.numpy as jnp
from jax.experimental import pallas as pl
from jax.experimental.pallas import tpu as pltpu

HIGHEST = jax.lax.Precision.HIGHEST  # only used by the pure-JAX reference


# ----------------------------- Pallas kernels ------------------------------

def _proj_kernel(xin_ref, w_ref, b_ref, o_ref):
    # Fused Q/K TCDC + V 1x1x1 conv:
    #   [im2col(x) | x_flat] @ [[Wcol_q   | Wcol_k   | 0   | 0],
    #                          [-th*Wd_q  | -th*Wd_k | W_v | 0]]  + bias
    # bf16 inputs, f32 accumulation, lane-dense (128-wide) output.
    o_ref[...] = (jnp.dot(xin_ref[...], w_ref[...],
                          preferred_element_type=jnp.float32)
                  + b_ref[...])


def _attn_kernel(num_heads, model_dims, project_out,
                 z_ref, aff_ref, wout_ref, bout_ref, o_ref):
    # One batch per grid step.  z = [q_raw | k_raw | v | pad] in flat (P, 128) layout.
    C = model_dims
    dh = C // num_heads
    z = z_ref[0]                                   # (P, 128) f32
    aff = aff_ref[...]                             # (4, C): q_scale, q_shift, k_scale, k_shift
    # BatchNorm affine (batch stats precomputed); 1/sharp_gradient folded into q's affine.
    q = (z[:, 0:C] * aff[0:1, :] + aff[1:2, :]).astype(jnp.bfloat16)
    k = (z[:, C:2 * C] * aff[2:3, :] + aff[3:4, :]).astype(jnp.bfloat16)
    v = z[:, 2 * C:3 * C].astype(jnp.bfloat16)

    dn = (((1,), (1,)), ((), ()))                  # contract last dims (q @ k^T)
    outs = []
    for h in range(num_heads):                     # static unroll over heads
        sl = slice(h * dh, (h + 1) * dh)
        s = jax.lax.dot_general(q[:, sl], k[:, sl], dn,
                                preferred_element_type=jnp.float32)   # (P, P)
        s = s - jnp.max(s, axis=-1, keepdims=True)
        p = jnp.exp(s)
        p = p * pl.reciprocal(jnp.sum(p, axis=-1, keepdims=True), approx=True)
        outs.append(jnp.dot(p.astype(jnp.bfloat16), v[:, sl],
                            preferred_element_type=jnp.float32))      # (P, dh)
    attn = jnp.concatenate(outs, axis=-1)          # (P, C) head merge

    if project_out:
        out = jnp.dot(attn.astype(jnp.bfloat16), wout_ref[...],
                      preferred_element_type=jnp.float32) + bout_ref[...]
    else:
        out = attn                                  # nn.Identity() path (num_heads == 1)
    o_ref[...] = out[None]


# --------------------------- pallas_call wrappers ---------------------------

def _pick_row_tile(n, cap=512):
    # Largest multiple of 8 <= cap that divides n (cap=512 keeps double-buffered
    # (TM, 896) bf16 tiles ~1 MiB, comfortably inside v7x's 64 MiB VMEM as well
    # as v5e/v6e); fall back to a single full block.
    best = None
    t = 8
    while t <= min(n, cap):
        if n % t == 0:
            best = t
        t += 8
    return best if best is not None else n


def _fused_qkv_projection(xin, w_all, bias_all):
    n, kc = xin.shape
    n_out = w_all.shape[1]
    tm = _pick_row_tile(n)
    flops = 2 * n * kc * n_out
    bytes_acc = xin.size * xin.dtype.itemsize + w_all.size * w_all.dtype.itemsize \
        + n * n_out * 4
    return pl.pallas_call(
        _proj_kernel,
        out_shape=jax.ShapeDtypeStruct((n, n_out), jnp.float32),
        grid=(n // tm,),
        in_specs=[pl.BlockSpec((tm, kc), lambda i: (i, 0)),
                  pl.BlockSpec((kc, n_out), lambda i: (0, 0)),
                  pl.BlockSpec((1, n_out), lambda i: (0, 0))],
        out_specs=pl.BlockSpec((tm, n_out), lambda i: (i, 0)),
        compiler_params=pltpu.CompilerParams(
            dimension_semantics=("parallel",)),
        cost_estimate=pl.CostEstimate(flops=flops, transcendentals=0,
                                      bytes_accessed=bytes_acc),
    )(xin, w_all, bias_all)


def _fused_attention(z, affine, wout, bout, num_heads, model_dims, project_out):
    b, p, zc = z.shape
    c = model_dims
    return pl.pallas_call(
        partial(_attn_kernel, num_heads, model_dims, project_out),
        out_shape=jax.ShapeDtypeStruct((b, p, c), jnp.float32),
        grid=(b,),
        in_specs=[pl.BlockSpec((1, p, zc), lambda i: (i, 0, 0)),
                  pl.BlockSpec((4, c), lambda i: (0, 0)),
                  pl.BlockSpec((c, c), lambda i: (0, 0)),
                  pl.BlockSpec((1, c), lambda i: (0, 0))],
        out_specs=pl.BlockSpec((1, p, c), lambda i: (i, 0, 0)),
        compiler_params=pltpu.CompilerParams(
            dimension_semantics=("parallel",)),
    )(z, affine, wout, bout)


# ------------------------------- JAX glue ----------------------------------

def _im2col3d(x_ncdhw, ksize, pad):
    # TODO(synk): im2col path implements stride=1, dilation=1, groups=1 only
    # (matches the chosen hyperparameters below).
    b, c, d, h, w = x_ncdhw.shape
    xp = jnp.pad(x_ncdhw, ((0, 0), (0, 0), (pad, pad), (pad, pad), (pad, pad)))
    cols = []
    for dz in range(ksize):
        for dy in range(ksize):
            for dx in range(ksize):
                cols.append(xp[:, :, dz:dz + d, dy:dy + h, dx:dx + w])
    patches = jnp.stack(cols, axis=2)                       # (B, C, k^3, D, H, W)
    patches = jnp.transpose(patches, (0, 3, 4, 5, 1, 2))    # (B, D, H, W, C, k^3)
    return patches.reshape(b * d * h * w, c * ksize ** 3)


def multi_head_tcdc_self_sg_attention(x, params, cfg):
    feature_size = cfg["feature_size"]
    num_heads = cfg["num_heads"]
    sg = cfg["sharp_gradient"]
    theta = cfg["tcdc_theta"]
    tcdc_eps = cfg["tcdc_eps"]
    k_size = cfg["tcdc_kernel_size"]
    pad = cfg["tcdc_padding"]

    b, p, c = x.shape
    depth = p // feature_size ** 2
    # (B, P, C) -> (B, C, D, H, W) for im2col; x is already (b, d, h, w, c)-ordered flat.
    x5 = x.reshape(b, depth, feature_size, feature_size, c).transpose(0, 4, 1, 2, 3)
    x_flat = x.reshape(b * p, c)
    patches = _im2col3d(x5, k_size, pad)                    # (N, C*k^3)
    xin = jnp.concatenate([patches, x_flat], axis=1)        # (N, Kc), Kc = C*k^3 + C

    n_out_pad = 128 * pl.cdiv(3 * c, 128)                   # lane-dense padded output width

    # TCDC branch handling: theta ~ 0 or depth-1 kernel -> plain conv (no diff term).
    use_diff = (math.fabs(theta - 0.0) >= tcdc_eps) and (k_size > 1)
    eff_theta = theta if use_diff else 0.0

    def tcdc_weight(w):
        wcol = w.reshape(c, -1).T                                       # (C*k^3, C)
        kd = w[:, :, 0].sum(axis=(2, 3)) + w[:, :, -1].sum(axis=(2, 3))  # (Cout, Cin)
        return jnp.concatenate([wcol, -eff_theta * kd.T], axis=0)       # (Kc, C)

    wq = tcdc_weight(params["w_q"])
    wk = tcdc_weight(params["w_k"])
    wv = jnp.concatenate([jnp.zeros((c * k_size ** 3, c), jnp.float32),
                          params["w_v"][:, :, 0, 0, 0].T], axis=0)
    w_all = jnp.concatenate([wq, wk, wv], axis=1)                       # (Kc, 3C)
    w_all = jnp.pad(w_all, ((0, 0), (0, n_out_pad - 3 * c)))
    bias_all = jnp.concatenate([
        (1.0 - eff_theta) * params["b_q"],
        (1.0 - eff_theta) * params["b_k"],
        params["b_v"],
        jnp.zeros((n_out_pad - 3 * c,), jnp.float32)]).reshape(1, n_out_pad)

    proj = _fused_qkv_projection(xin.astype(jnp.bfloat16),
                                 w_all.astype(jnp.bfloat16), bias_all)  # (N, 128) f32

    # BatchNorm3d (training-mode batch statistics over B*D*H*W) folded into a
    # per-channel affine; the tiny global reduction is left to XLA and the
    # normalize itself is fused into the attention kernel.
    def bn_affine(t, gamma, beta, eps=1e-5):
        mean = jnp.mean(t, axis=0)
        var = jnp.mean(jnp.square(t - mean), axis=0)
        scale = gamma * jax.lax.rsqrt(var + eps)
        return scale, beta - mean * scale

    sq, hq = bn_affine(proj[:, 0:c], params["bn_q_gamma"], params["bn_q_beta"])
    sk, hk = bn_affine(proj[:, c:2 * c], params["bn_k_gamma"], params["bn_k_beta"])
    inv_sg = 1.0 / sg                                        # fold 1/sharp_gradient into q
    affine = jnp.stack([sq * inv_sg, hq * inv_sg, sk, hk], axis=0).astype(jnp.float32)

    project_out = num_heads != 1
    if project_out:
        wout = params["w_out"].T
        bout = params["b_out"].reshape(1, c)
    else:
        wout = jnp.eye(c, dtype=jnp.float32)                 # unused (Identity path)
        bout = jnp.zeros((1, c), jnp.float32)

    # TODO(synk): nonzero attention_dropout (stochastic) not implemented (p=0 here).
    z = proj.reshape(b, p, n_out_pad)
    return _fused_attention(z, affine, wout.astype(jnp.bfloat16),
                            bout.astype(jnp.float32), num_heads, c, project_out)


# ------------------------- pure-JAX reference check -------------------------

def reference_forward(x, params, cfg):
    feature_size = cfg["feature_size"]
    num_heads = cfg["num_heads"]
    sg = cfg["sharp_gradient"]
    theta = cfg["tcdc_theta"]
    pad = cfg["tcdc_padding"]

    b, p, c = x.shape
    depth = p // feature_size ** 2
    x5 = x.reshape(b, depth, feature_size, feature_size, c).transpose(0, 4, 1, 2, 3)

    def conv3d(inp, w, bias, padding):
        out = jax.lax.conv_general_dilated(
            inp, w, window_strides=(1, 1, 1),
            padding=[(padding, padding)] * 3,
            dimension_numbers=("NCDHW", "OIDHW", "NCDHW"),
            precision=HIGHEST)
        return out + bias[None, :, None, None, None]

    def tcdc(inp, w, bias):
        out_normal = conv3d(inp, w, bias, pad)
        kd = w[:, :, 0].sum(axis=(2, 3)) + w[:, :, -1].sum(axis=(2, 3))
        out_diff = conv3d(inp, kd[:, :, None, None, None], bias, 0)
        return out_normal - theta * out_diff

    def bn(t, g, be):
        mean = t.mean(axis=(0, 2, 3, 4), keepdims=True)
        var = ((t - mean) ** 2).mean(axis=(0, 2, 3, 4), keepdims=True)
        return (g[None, :, None, None, None] * (t - mean)
                / jnp.sqrt(var + 1e-5) + be[None, :, None, None, None])

    q = bn(tcdc(x5, params["w_q"], params["b_q"]),
           params["bn_q_gamma"], params["bn_q_beta"])
    k = bn(tcdc(x5, params["w_k"], params["b_k"]),
           params["bn_k_gamma"], params["bn_k_beta"])
    v = conv3d(x5, params["w_v"], params["b_v"], 0)

    def split(t):
        t = t.transpose(0, 2, 3, 4, 1).reshape(b, p, c)
        return t.reshape(b, p, num_heads, c // num_heads).transpose(0, 2, 1, 3)

    q, k, v = split(q), split(k), split(v)
    s = jnp.einsum("bhpd,bhkd->bhpk", q, k, precision=HIGHEST) / sg
    s = jax.nn.softmax(s, axis=-1)
    a = jnp.einsum("bhpk,bhkd->bhpd", s, v, precision=HIGHEST)
    a = a.transpose(0, 2, 1, 3).reshape(b, p, c)
    return jnp.dot(a, params["w_out"].T, precision=HIGHEST) + params["b_out"]


# ---------------------------------- main ------------------------------------

if __name__ == "__main__":
    cfg = dict(
        feature_size=4, sharp_gradient=math.sqrt(8.0), num_heads=4,
        model_dims=32, tcdc_kernel_size=3, tcdc_stride=1, tcdc_padding=1,
        tcdc_dilation=1, tcdc_groups=1, tcdc_bias=True, tcdc_theta=0.7,
        tcdc_eps=1e-8, attention_dropout=0.0,
    )
    C = cfg["model_dims"]
    K = cfg["tcdc_kernel_size"]
    DEPTH = 2
    B = 2
    P = DEPTH * cfg["feature_size"] ** 2     # 32 patches

    key = jax.random.PRNGKey(0)
    ks = jax.random.split(key, 9)
    params = {
        "w_q": jax.random.normal(ks[0], (C, C, K, K, K), jnp.float32) * 0.05,
        "b_q": jax.random.normal(ks[1], (C,), jnp.float32) * 0.05,
        "w_k": jax.random.normal(ks[2], (C, C, K, K, K), jnp.float32) * 0.05,
        "b_k": jax.random.normal(ks[3], (C,), jnp.float32) * 0.05,
        "w_v": jax.random.normal(ks[4], (C, C, 1, 1, 1), jnp.float32) * 0.1,
        "b_v": jax.random.normal(ks[5], (C,), jnp.float32) * 0.05,
        "bn_q_gamma": jnp.ones((C,), jnp.float32),
        "bn_q_beta": jnp.zeros((C,), jnp.float32),
        "bn_k_gamma": jnp.ones((C,), jnp.float32),
        "bn_k_beta": jnp.zeros((C,), jnp.float32),
        "w_out": jax.random.normal(ks[6], (C, C), jnp.float32) * 0.1,
        "b_out": jax.random.normal(ks[7], (C,), jnp.float32) * 0.05,
    }
    x = jax.random.normal(ks[8], (B, P, C), jnp.float32)

    fwd = jax.jit(partial(multi_head_tcdc_self_sg_attention, cfg=cfg))
    out = jax.block_until_ready(fwd(x, params))
    assert out.shape == (B, P, C)

    ref = reference_forward(x, params, cfg)
    err = float(jnp.max(jnp.abs(out - ref)))
    # bf16 MXU inputs (f32 accumulation) -> slightly looser tolerance than pure f32.
    assert jnp.allclose(out, ref, atol=2e-2, rtol=2e-2), f"max abs err {err}"
    print("KERNEL_OK")
</pallas_src>

<mosaic_0001>
module attributes {stable_mosaic.version = 11 : i64} {
  func.func @_proj_kernel(%arg0: i32, %arg1: memref<64x896xbf16, #tpu.memory_space<vmem>>, %arg2: memref<896x128xbf16, #tpu.memory_space<vmem>>, %arg3: memref<1x128xf32, #tpu.memory_space<vmem>>, %arg4: memref<64x128xf32, #tpu.memory_space<vmem>>) attributes {dimension_semantics = [#tpu.dimension_semantics<parallel>], iteration_bounds = array<i64: 1>, scalar_prefetch = 0 : i64, scratch_operands = 0 : i64, tpu.core_type = #tpu.core_type<tc>, window_params = [{transform_indices = @transform_0, window_bounds = array<i64: 64, 896>}, {pipeline_mode = #tpu.pipeline_mode<synchronous>, transform_indices = @transform_1, window_bounds = array<i64: 896, 128>}, {pipeline_mode = #tpu.pipeline_mode<synchronous>, transform_indices = @transform_2, window_bounds = array<i64: 1, 128>}, {transform_indices = @transform_3, window_bounds = array<i64: 64, 128>}]} {
    %c0 = arith.constant 0 : index
    %c0_0 = arith.constant 0 : index
    %0 = vector.load %arg1[%c0, %c0_0] : memref<64x896xbf16, #tpu.memory_space<vmem>>, vector<64x896xbf16>
    %c0_1 = arith.constant 0 : index
    %c0_2 = arith.constant 0 : index
    %1 = vector.load %arg2[%c0_1, %c0_2] : memref<896x128xbf16, #tpu.memory_space<vmem>>, vector<896x128xbf16>
    %cst = arith.constant dense<0.000000e+00> : vector<64x128xf32>
    %2 = tpu.matmul %0, %1, %cst {dimension_numbers = #tpu.dot_dimension_numbers<[1], [0], [0], [1], [0, 0, 1, 1], [], []>} : vector<64x896xbf16>, vector<896x128xbf16>, vector<64x128xf32> -> vector<64x128xf32>
    %c0_3 = arith.constant 0 : index
    %c0_4 = arith.constant 0 : index
    %3 = vector.load %arg3[%c0_3, %c0_4] : memref<1x128xf32, #tpu.memory_space<vmem>>, vector<1x128xf32>
    %4 = vector.broadcast %3 : vector<1x128xf32> to vector<64x128xf32>
    %5 = arith.addf %2, %4 : vector<64x128xf32>
    %c0_5 = arith.constant 0 : index
    %c0_6 = arith.constant 0 : index
    %6 = vector.load %arg4[%c0_5, %c0_6] : memref<64x128xf32, #tpu.memory_space<vmem>>, vector<64x128xf32>
    tpu.vector_store %arg4[%c0_5, %c0_6], %5 {strides = array<i32>} : memref<64x128xf32, #tpu.memory_space<vmem>>, vector<64x128xf32>,
    return
  }
  func.func @transform_0(%arg0: i32) -> (i32, i32) {
    %c0_i32 = arith.constant 0 : i32
    %c0_i32_0 = arith.constant 0 : i32
    return %arg0, %c0_i32 : i32, i32
  }
  func.func @transform_1(%arg0: i32) -> (i32, i32) {
    %c0_i32 = arith.constant 0 : i32
    %c0_i32_0 = arith.constant 0 : i32
    %c0_i32_1 = arith.constant 0 : i32
    return %c0_i32, %c0_i32_0 : i32, i32
  }
  func.func @transform_2(%arg0: i32) -> (i32, i32) {
    %c0_i32 = arith.constant 0 : i32
    %c0_i32_0 = arith.constant 0 : i32
    %c0_i32_1 = arith.constant 0 : i32
    return %c0_i32, %c0_i32_0 : i32, i32
  }
  func.func @transform_3(%arg0: i32) -> (i32, i32) {
    %c0_i32 = arith.constant 0 : i32
    %c0_i32_0 = arith.constant 0 : i32
    return %arg0, %c0_i32 : i32, i32
  }
}

module attributes {stable_mosaic.version = 11 : i64} {
  func.func @_attn_kernel(%arg0: i32, %arg1: memref<1x32x128xf32, #tpu.memory_space<vmem>>, %arg2: memref<4x32xf32, #tpu.memory_space<vmem>>, %arg3: memref<32x32xbf16, #tpu.memory_space<vmem>>, %arg4: memref<1x32xf32, #tpu.memory_space<vmem>>, %arg5: memref<1x32x32xf32, #tpu.memory_space<vmem>>) attributes {dimension_semantics = [#tpu.dimension_semantics<parallel>], iteration_bounds = array<i64: 2>, scalar_prefetch = 0 : i64, scratch_operands = 0 : i64, tpu.core_type = #tpu.core_type<tc>, window_params = [{transform_indices = @transform_0, window_bounds = array<i64: 1, 32, 128>}, {pipeline_mode = #tpu.pipeline_mode<synchronous>, transform_indices = @transform_1, window_bounds = array<i64: 4, 32>}, {pipeline_mode = #tpu.pipeline_mode<synchronous>, transform_indices = @transform_2, window_bounds = array<i64: 32, 32>}, {pipeline_mode = #tpu.pipeline_mode<synchronous>, transform_indices = @transform_3, window_bounds = array<i64: 1, 32>}, {transform_indices = @transform_4, window_bounds = array<i64: 1, 32, 32>}]} {
    %c0 = arith.constant 0 : index
    %c0_0 = arith.constant 0 : index
    %c0_1 = arith.constant 0 : index
    %0 = vector.load %arg1[%c0, %c0_0, %c0_1] : memref<1x32x128xf32, #tpu.memory_space<vmem>>, vector<1x32x128xf32>
    %1 = vector.shape_cast %0 : vector<1x32x128xf32> to vector<32x128xf32>
    %c0_2 = arith.constant 0 : index
    %c0_3 = arith.constant 0 : index
    %2 = vector.load %arg2[%c0_2, %c0_3] : memref<4x32xf32, #tpu.memory_space<vmem>>, vector<4x32xf32>
    %3 = vector.extract_strided_slice %1 {offsets = [0, 0], sizes = [32, 32], strides = [1, 1]} : vector<32x128xf32> to vector<32x32xf32>
    %4 = vector.extract_strided_slice %2 {offsets = [0, 0], sizes = [1, 32], strides = [1, 1]} : vector<4x32xf32> to vector<1x32xf32>
    %5 = vector.broadcast %4 : vector<1x32xf32> to vector<32x32xf32>
    %6 = arith.mulf %3, %5 : vector<32x32xf32>
    %7 = vector.extract_strided_slice %2 {offsets = [1, 0], sizes = [1, 32], strides = [1, 1]} : vector<4x32xf32> to vector<1x32xf32>
    %8 = vector.broadcast %7 : vector<1x32xf32> to vector<32x32xf32>
    %9 = arith.addf %6, %8 : vector<32x32xf32>
    %10 = arith.truncf %9 : vector<32x32xf32> to vector<32x32xbf16>
    %11 = vector.extract_strided_slice %1 {offsets = [0, 32], sizes = [32, 32], strides = [1, 1]} : vector<32x128xf32> to vector<32x32xf32>
    %12 = vector.extract_strided_slice %2 {offsets = [2, 0], sizes = [1, 32], strides = [1, 1]} : vector<4x32xf32> to vector<1x32xf32>
    %13 = vector.broadcast %12 : vector<1x32xf32> to vector<32x32xf32>
    %14 = arith.mulf %11, %13 : vector<32x32xf32>
    %15 = vector.extract_strided_slice %2 {offsets = [3, 0], sizes = [1, 32], strides = [1, 1]} : vector<4x32xf32> to vector<1x32xf32>
    %16 = vector.broadcast %15 : vector<1x32xf32> to vector<32x32xf32>
    %17 = arith.addf %14, %16 : vector<32x32xf32>
    %18 = arith.truncf %17 : vector<32x32xf32> to vector<32x32xbf16>
    %19 = vector.extract_strided_slice %1 {offsets = [0, 64], sizes = [32, 32], strides = [1, 1]} : vector<32x128xf32> to vector<32x32xf32>
    %20 = arith.truncf %19 : vector<32x32xf32> to vector<32x32xbf16>
    %21 = vector.extract_strided_slice %10 {offsets = [0, 0], sizes = [32, 8], strides = [1, 1]} : vector<32x32xbf16> to vector<32x8xbf16>
    %22 = vector.extract_strided_slice %18 {offsets = [0, 0], sizes = [32, 8], strides = [1, 1]} : vector<32x32xbf16> to vector<32x8xbf16>
    %cst = arith.constant dense<0.000000e+00> : vector<32x32xf32>
    %23 = tpu.matmul %21, %22, %cst {dimension_numbers = #tpu.dot_dimension_numbers<[1], [1], [0], [0], [0, 0, 1, 0], [], []>} : vector<32x8xbf16>, vector<32x8xbf16>, vector<32x32xf32> -> vector<32x32xf32>
    %cst_4 = arith.constant dense<0xFF800000> : vector<32xf32>
    %24 = vector.multi_reduction <maximumf>, %23, %cst_4 [1] : vector<32x32xf32> to vector<32xf32>
    %25 = vector.shape_cast %24 : vector<32xf32> to vector<32x1xf32>
    %26 = vector.broadcast %25 : vector<32x1xf32> to vector<32x32xf32>
    %27 = arith.subf %23, %26 : vector<32x32xf32>
    %28 = math.exp %27 : vector<32x32xf32>
    %cst_5 = arith.constant dense<0.000000e+00> : vector<32xf32>
    %29 = vector.multi_reduction <add>, %28, %cst_5 [1] : vector<32x32xf32> to vector<32xf32>
    %30 = vector.shape_cast %29 : vector<32xf32> to vector<32x1xf32>
    %31 = tpu.reciprocal %30 {approx = true} : vector<32x1xf32> -> vector<32x1xf32>
    %32 = vector.broadcast %31 : vector<32x1xf32> to vector<32x32xf32>
    %33 = arith.mulf %28, %32 : vector<32x32xf32>
    %34 = arith.truncf %33 : vector<32x32xf32> to vector<32x32xbf16>
    %35 = vector.extract_strided_slice %20 {offsets = [0, 0], sizes = [32, 8], strides = [1, 1]} : vector<32x32xbf16> to vector<32x8xbf16>
    %cst_6 = arith.constant dense<0.000000e+00> : vector<32x8xf32>
    %36 = tpu.matmul %34, %35, %cst_6 {dimension_numbers = #tpu.dot_dimension_numbers<[1], [0], [0], [1], [0, 0, 1, 1], [], []>} : vector<32x32xbf16>, vector<32x8xbf16>, vector<32x8xf32> -> vector<32x8xf32>
    %37 = vector.extract_strided_slice %10 {offsets = [0, 8], sizes = [32, 8], strides = [1, 1]} : vector<32x32xbf16> to vector<32x8xbf16>
    %38 = vector.extract_strided_slice %18 {offsets = [0, 8], sizes = [32, 8], strides = [1, 1]} : vector<32x32xbf16> to vector<32x8xbf16>
    %cst_7 = arith.constant dense<0.000000e+00> : vector<32x32xf32>
    %39 = tpu.matmul %37, %38, %cst_7 {dimension_numbers = #tpu.dot_dimension_numbers<[1], [1], [0], [0], [0, 0, 1, 0], [], []>} : vector<32x8xbf16>, vector<32x8xbf16>, vector<32x32xf32> -> vector<32x32xf32>
    %cst_8 = arith.constant dense<0xFF800000> : vector<32xf32>
    %40 = vector.multi_reduction <maximumf>, %39, %cst_8 [1] : vector<32x32xf32> to vector<32xf32>
    %41 = vector.shape_cast %40 : vector<32xf32> to vector<32x1xf32>
    %42 = vector.broadcast %41 : vector<32x1xf32> to vector<32x32xf32>
    %43 = arith.subf %39, %42 : vector<32x32xf32>
    %44 = math.exp %43 : vector<32x32xf32>
    %cst_9 = arith.constant dense<0.000000e+00> : vector<32xf32>
    %45 = vector.multi_reduction <add>, %44, %cst_9 [1] : vector<32x32xf32> to vector<32xf32>
    %46 = vector.shape_cast %45 : vector<32xf32> to vector<32x1xf32>
    %47 = tpu.reciprocal %46 {approx = true} : vector<32x1xf32> -> vector<32x1xf32>
    %48 = vector.broadcast %47 : vector<32x1xf32> to vector<32x32xf32>
    %49 = arith.mulf %44, %48 : vector<32x32xf32>
    %50 = arith.truncf %49 : vector<32x32xf32> to vector<32x32xbf16>
    %51 = vector.extract_strided_slice %20 {offsets = [0, 8], sizes = [32, 8], strides = [1, 1]} : vector<32x32xbf16> to vector<32x8xbf16>
    %cst_10 = arith.constant dense<0.000000e+00> : vector<32x8xf32>
    %52 = tpu.matmul %50, %51, %cst_10 {dimension_numbers = #tpu.dot_dimension_numbers<[1], [0], [0], [1], [0, 0, 1, 1], [], []>} : vector<32x32xbf16>, vector<32x8xbf16>, vector<32x8xf32> -> vector<32x8xf32>
    %53 = vector.extract_strided_slice %10 {offsets = [0, 16], sizes = [32, 8], strides = [1, 1]} : vector<32x32xbf16> to vector<32x8xbf16>
    %54 = vector.extract_strided_slice %18 {offsets = [0, 16], sizes = [32, 8], strides = [1, 1]} : vector<32x32xbf16> to vector<32x8xbf16>
    %cst_11 = arith.constant dense<0.000000e+00> : vector<32x32xf32>
    %55 = tpu.matmul %53, %54, %cst_11 {dimension_numbers = #tpu.dot_dimension_numbers<[1], [1], [0], [0], [0, 0, 1, 0], [], []>} : vector<32x8xbf16>, vector<32x8xbf16>, vector<32x32xf32> -> vector<32x32xf32>
    %cst_12 = arith.constant dense<0xFF800000> : vector<32xf32>
    %56 = vector.multi_reduction <maximumf>, %55, %cst_12 [1] : vector<32x32xf32> to vector<32xf32>
    %57 = vector.shape_cast %56 : vector<32xf32> to vector<32x1xf32>
    %58 = vector.broadcast %57 : vector<32x1xf32> to vector<32x32xf32>
    %59 = arith.subf %55, %58 : vector<32x32xf32>
    %60 = math.exp %59 : vector<32x32xf32>
    %cst_13 = arith.constant dense<0.000000e+00> : vector<32xf32>
    %61 = vector.multi_reduction <add>, %60, %cst_13 [1] : vector<32x32xf32> to vector<32xf32>
    %62 = vector.shape_cast %61 : vector<32xf32> to vector<32x1xf32>
    %63 = tpu.reciprocal %62 {approx = true} : vector<32x1xf32> -> vector<32x1xf32>
    %64 = vector.broadcast %63 : vector<32x1xf32> to vector<32x32xf32>
    %65 = arith.mulf %60, %64 : vector<32x32xf32>
    %66 = arith.truncf %65 : vector<32x32xf32> to vector<32x32xbf16>
    %67 = vector.extract_strided_slice %20 {offsets = [0, 16], sizes = [32, 8], strides = [1, 1]} : vector<32x32xbf16> to vector<32x8xbf16>
    %cst_14 = arith.constant dense<0.000000e+00> : vector<32x8xf32>
    %68 = tpu.matmul %66, %67, %cst_14 {dimension_numbers = #tpu.dot_dimension_numbers<[1], [0], [0], [1], [0, 0, 1, 1], [], []>} : vector<32x32xbf16>, vector<32x8xbf16>, vector<32x8xf32> -> vector<32x8xf32>
    %69 = vector.extract_strided_slice %10 {offsets = [0, 24], sizes = [32, 8], strides = [1, 1]} : vector<32x32xbf16> to vector<32x8xbf16>
    %70 = vector.extract_strided_slice %18 {offsets = [0, 24], sizes = [32, 8], strides = [1, 1]} : vector<32x32xbf16> to vector<32x8xbf16>
    %cst_15 = arith.constant dense<0.000000e+00> : vector<32x32xf32>
    %71 = tpu.matmul %69, %70, %cst_15 {dimension_numbers = #tpu.dot_dimension_numbers<[1], [1], [0], [0], [0, 0, 1, 0], [], []>} : vector<32x8xbf16>, vector<32x8xbf16>, vector<32x32xf32> -> vector<32x32xf32>
    %cst_16 = arith.constant dense<0xFF800000> : vector<32xf32>
    %72 = vector.multi_reduction <maximumf>, %71, %cst_16 [1] : vector<32x32xf32> to vector<32xf32>
    %73 = vector.shape_cast %72 : vector<32xf32> to vector<32x1xf32>
    %74 = vector.broadcast %73 : vector<32x1xf32> to vector<32x32xf32>
    %75 = arith.subf %71, %74 : vector<32x32xf32>
    %76 = math.exp %75 : vector<32x32xf32>
    %cst_17 = arith.constant dense<0.000000e+00> : vector<32xf32>
    %77 = vector.multi_reduction <add>, %76, %cst_17 [1] : vector<32x32xf32> to vector<32xf32>
    %78 = vector.shape_cast %77 : vector<32xf32> to vector<32x1xf32>
    %79 = tpu.reciprocal %78 {approx = true} : vector<32x1xf32> -> vector<32x1xf32>
    %80 = vector.broadcast %79 : vector<32x1xf32> to vector<32x32xf32>
    %81 = arith.mulf %76, %80 : vector<32x32xf32>
    %82 = arith.truncf %81 : vector<32x32xf32> to vector<32x32xbf16>
    %83 = vector.extract_strided_slice %20 {offsets = [0, 24], sizes = [32, 8], strides = [1, 1]} : vector<32x32xbf16> to vector<32x8xbf16>
    %cst_18 = arith.constant dense<0.000000e+00> : vector<32x8xf32>
    %84 = tpu.matmul %82, %83, %cst_18 {dimension_numbers = #tpu.dot_dimension_numbers<[1], [0], [0], [1], [0, 0, 1, 1], [], []>} : vector<32x32xbf16>, vector<32x8xbf16>, vector<32x8xf32> -> vector<32x8xf32>
    %85 = tpu.concatenate %36, %52, %68, %84 in 1 : vector<32x8xf32>, vector<32x8xf32>, vector<32x8xf32>, vector<32x8xf32> -> vector<32x32xf32>
    %86 = arith.truncf %85 : vector<32x32xf32> to vector<32x32xbf16>
    %c0_19 = arith.constant 0 : index
    %c0_20 = arith.constant 0 : index
    %87 = vector.load %arg3[%c0_19, %c0_20] : memref<32x32xbf16, #tpu.memory_space<vmem>>, vector<32x32xbf16>
    %cst_21 = arith.constant dense<0.000000e+00> : vector<32x32xf32>
    %88 = tpu.matmul %86, %87, %cst_21 {dimension_numbers = #tpu.dot_dimension_numbers<[1], [0], [0], [1], [0, 0, 1, 1], [], []>} : vector<32x32xbf16>, vector<32x32xbf16>, vector<32x32xf32> -> vector<32x32xf32>
    %c0_22 = arith.constant 0 : index
    %c0_23 = arith.constant 0 : index
    %89 = vector.load %arg4[%c0_22, %c0_23] : memref<1x32xf32, #tpu.memory_space<vmem>>, vector<1x32xf32>
    %90 = vector.broadcast %89 : vector<1x32xf32> to vector<32x32xf32>
    %91 = arith.addf %88, %90 : vector<32x32xf32>
    %92 = vector.shape_cast %91 : vector<32x32xf32> to vector<1x32x32xf32>
    %c0_24 = arith.constant 0 : index
    %c0_25 = arith.constant 0 : index
    %c0_26 = arith.constant 0 : index
    %93 = vector.load %arg5[%c0_24, %c0_25, %c0_26] : memref<1x32x32xf32, #tpu.memory_space<vmem>>, vector<1x32x32xf32>
    tpu.vector_store %arg5[%c0_24, %c0_25, %c0_26], %92 {strides = array<i32>} : memref<1x32x32xf32, #tpu.memory_space<vmem>>, vector<1x32x32xf32>,
    return
  }
  func.func @transform_0(%arg0: i32) -> (i32, i32, i32) {
    %c0_i32 = arith.constant 0 : i32
    %c0_i32_0 = arith.constant 0 : i32
    %c0_i32_1 = arith.constant 0 : i32
    return %arg0, %c0_i32, %c0_i32_0 : i32, i32, i32
  }
  func.func @transform_1(%arg0: i32) -> (i32, i32) {
    %c0_i32 = arith.constant 0 : i32
    %c0_i32_0 = arith.constant 0 : i32
    %c0_i32_1 = arith.constant 0 : i32
    return %c0_i32, %c0_i32_0 : i32, i32
  }
  func.func @transform_2(%arg0: i32) -> (i32, i32) {
    %c0_i32 = arith.constant 0 : i32
    %c0_i32_0 = arith.constant 0 : i32
    %c0_i32_1 = arith.constant 0 : i32
    return %c0_i32, %c0_i32_0 : i32, i32
  }
  func.func @transform_3(%arg0: i32) -> (i32, i32) {
    %c0_i32 = arith.constant 0 : i32
    %c0_i32_0 = arith.constant 0 : i32
    %c0_i32_1 = arith.constant 0 : i32
    return %c0_i32, %c0_i32_0 : i32, i32
  }
  func.func @transform_4(%arg0: i32) -> (i32, i32, i32) {
    %c0_i32 = arith.constant 0 : i32
    %c0_i32_0 = arith.constant 0 : i32
    %c0_i32_1 = arith.constant 0 : i32
    return %arg0, %c0_i32, %c0_i32_0 : i32, i32, i32
  }
}

</mosaic_0001>

<llo_original>
// kernel: multi_head_tcdc_self_sg_attention.2
$region0: #{multi_head_tcdc_self_sg_attention.2}
  #allocation0 [shape = 'u32[]', space=smem, size = 0x4, offset = 0x4, fixed_abs, tag = 'smem constant byte address 0x4 - core index']
  #allocation1 [shape = 'u32[144,128]{1,0:T(1,128)}', space=vmem, size = 0x12000, scoped, tag = 'internal scratch']
  %s0 = inlined_call_operand.vmem [shape: bf16[64,896], index: 0, kind: input, shape index: {}]
  %s1 = inlined_call_operand.vmem [shape: bf16[896,128], index: 1, kind: input, shape index: {}]
  %s2 = inlined_call_operand.vmem [shape: f32[1,128], index: 2, kind: input, shape index: {}]
  %s3 = inlined_call_operand.vmem [shape: f32[64,128], index: 3, kind: output, shape index: {}]
  %s4 = sld [smem:[#allocation0]]
  $region22: #{multi_head_tcdc_self_sg_attention.2} parent=0
    _
  %s6 = ssub.s32 1, %s4
  %s7 = scalar_select 0, %s6, %s4
  // Predicated region
  $region2: #{multi_head_tcdc_self_sg_attention.2} parent=0 // pred_check
    _
  $region3: #{multi_head_tcdc_self_sg_attention.2} parent=0 // pred_check_branch
    %9 = sbr.rel (0) target = $region5
  $region4: #{multi_head_tcdc_self_sg_attention.2} parent=0 // pred_region
    _
  $region5: #{multi_head_tcdc_self_sg_attention.2} parent=0 // pred_fallthru
    _
  // Predicated region
  $region6: #{multi_head_tcdc_self_sg_attention.2} parent=0 // pred_check
    _
  $region7: #{multi_head_tcdc_self_sg_attention.2} parent=0 // pred_check_branch
    %11 = sbr.rel (0) target = $region9
  $region8: #{multi_head_tcdc_self_sg_attention.2} parent=0 // pred_region
    _
  $region9: #{multi_head_tcdc_self_sg_attention.2} parent=0 // pred_fallthru
    _
  // Predicated region
  $region10: #{multi_head_tcdc_self_sg_attention.2} parent=0 // pred_check
    _
  $region11: #{multi_head_tcdc_self_sg_attention.2} parent=0 // pred_check_branch
    %13 = sbr.rel (0) target = $region13
  $region12: #{multi_head_tcdc_self_sg_attention.2} parent=0 // pred_region
    _
  $region13: #{multi_head_tcdc_self_sg_attention.2} parent=0 // pred_fallthru
    _
  %v15 = vld [vmem:[%s0] sm:$0xff]
  %v16 = vld [vmem:[%s0 + $0x8] sm:$0xff]
  %v17 = vld [vmem:[%s0 + $0x10] sm:$0xff]
  %v18 = vld [vmem:[%s0 + $0x18] sm:$0xf]
  %v19 = vld [vmem:[%s0 + $0x1c] sm:$0xff]
  %v20 = vld [vmem:[%s0 + $0x24] sm:$0xff]
  %v21 = vld [vmem:[%s0 + $0x2c] sm:$0xff]
  %v22 = vld [vmem:[%s0 + $0x34] sm:$0xf]
  %v23 = vld [vmem:[%s0 + $0x38] sm:$0xff]
  %v24 = vld [vmem:[%s0 + $0x40] sm:$0xff]
  %v25 = vld [vmem:[%s0 + $0x48] sm:$0xff]
  %v26 = vld [vmem:[%s0 + $0x50] sm:$0xf]
  %v27 = vld [vmem:[%s0 + $0x54] sm:$0xff]
  %v28 = vld [vmem:[%s0 + $0x5c] sm:$0xff]
  %v29 = vld [vmem:[%s0 + $0x64] sm:$0xff]
  %v30 = vld [vmem:[%s0 + $0x6c] sm:$0xf]
  %v31 = vld [vmem:[%s0 + $0x70] sm:$0xff]
  %v32 = vld [vmem:[%s0 + $0x78] sm:$0xff]
  %v33 = vld [vmem:[%s0 + $0x80] sm:$0xff]
  %v34 = vld [vmem:[%s0 + $0x88] sm:$0xf]
  %v35 = vld [vmem:[%s0 + $0x8c] sm:$0xff]
  %v36 = vld [vmem:[%s0 + $0x94] sm:$0xff]
  %v37 = vld [vmem:[%s0 + $0x9c] sm:$0xff]
  %v38 = vld [vmem:[%s0 + $0xa4] sm:$0xf]
  %v39 = vld [vmem:[%s0 + $0xa8] sm:$0xff]
  %v40 = vld [vmem:[%s0 + $0xb0] sm:$0xff]
  %v41 = vld [vmem:[%s0 + $0xb8] sm:$0xff]
  %v42 = vld [vmem:[%s0 + $0xc0] sm:$0xf]
  %v43 = vld [vmem:[%s0 + $0xc4] sm:$0xff]
  %v44 = vld [vmem:[%s0 + $0xcc] sm:$0xff]
  %v45 = vld [vmem:[%s0 + $0xd4] sm:$0xff]
  %v46 = vld [vmem:[%s0 + $0xdc] sm:$0xf]
  %v47 = vld [vmem:[%s1] sm:$0xf]
  %v48 = vld [vmem:[%s1 + $0x4] sm:$0xf]
  %v49 = vld [vmem:[%s1 + $0x8] sm:$0xf]
  %v50 = vld [vmem:[%s1 + $0xc] sm:$0xf]
  %v51 = vld [vmem:[%s1 + $0x10] sm:$0xf]
  %v52 = vld [vmem:[%s1 + $0x14] sm:$0xf]
  %v53 = vld [vmem:[%s1 + $0x18] sm:$0xf]
  %v54 = vld [vmem:[%s1 + $0x1c] sm:$0xf]
  %v55 = vld [vmem:[%s1 + $0x20] sm:$0xf]
  %v56 = vld [vmem:[%s1 + $0x24] sm:$0xf]
  %v57 = vld [vmem:[%s1 + $0x28] sm:$0xf]
  %v58 = vld [vmem:[%s1 + $0x2c] sm:$0xf]
  %v59 = vld [vmem:[%s1 + $0x30] sm:$0xf]
  %v60 = vld [vmem:[%s1 + $0x34] sm:$0xf]
  %v61 = vld [vmem:[%s1 + $0x38] sm:$0xf]
  %v62 = vld [vmem:[%s1 + $0x3c] sm:$0xf]
  %v63 = vld [vmem:[%s1 + $0x40] sm:$0xf]
  %v64 = vld [vmem:[%s1 + $0x44] sm:$0xf]
  %v65 = vld [vmem:[%s1 + $0x48] sm:$0xf]
  %v66 = vld [vmem:[%s1 + $0x4c] sm:$0xf]
  %v67 = vld [vmem:[%s1 + $0x50] sm:$0xf]
  %v68 = vld [vmem:[%s1 + $0x54] sm:$0xf]
  %v69 = vld [vmem:[%s1 + $0x58] sm:$0xf]
  %v70 = vld [vmem:[%s1 + $0x5c] sm:$0xf]
  %v71 = vld [vmem:[%s1 + $0x60] sm:$0xf]
  %v72 = vld [vmem:[%s1 + $0x64] sm:$0xf]
  %v73 = vld [vmem:[%s1 + $0x68] sm:$0xf]
  %v74 = vld [vmem:[%s1 + $0x6c] sm:$0xf]
  %v75 = vld [vmem:[%s1 + $0x70] sm:$0xf]
  %v76 = vld [vmem:[%s1 + $0x74] sm:$0xf]
  %v77 = vld [vmem:[%s1 + $0x78] sm:$0xf]
  %v78 = vld [vmem:[%s1 + $0x7c] sm:$0xf]
  %v79 = vld [vmem:[%s1 + $0x80] sm:$0xf]
  %v80 = vld [vmem:[%s1 + $0x84] sm:$0xf]
  %v81 = vld [vmem:[%s1 + $0x88] sm:$0xf]
  %v82 = vld [vmem:[%s1 + $0x8c] sm:$0xf]
  %v83 = vld [vmem:[%s1 + $0x90] sm:$0xf]
  %v84 = vld [vmem:[%s1 + $0x94] sm:$0xf]
  %v85 = vld [vmem:[%s1 + $0x98] sm:$0xf]
  %v86 = vld [vmem:[%s1 + $0x9c] sm:$0xf]
  %v87 = vld [vmem:[%s1 + $0xa0] sm:$0xf]
  %v88 = vld [vmem:[%s1 + $0xa4] sm:$0xf]
  %v89 = vld [vmem:[%s1 + $0xa8] sm:$0xf]
  %v90 = vld [vmem:[%s1 + $0xac] sm:$0xf]
  %v91 = vld [vmem:[%s1 + $0xb0] sm:$0xf]
  %v92 = vld [vmem:[%s1 + $0xb4] sm:$0xf]
  %v93 = vld [vmem:[%s1 + $0xb8] sm:$0xf]
  %v94 = vld [vmem:[%s1 + $0xbc] sm:$0xf]
  %v95 = vld [vmem:[%s1 + $0xc0] sm:$0xf]
  %v96 = vld [vmem:[%s1 + $0xc4] sm:$0xf]
  %v97 = vld [vmem:[%s1 + $0xc8] sm:$0xf]
  %v98 = vld [vmem:[%s1 + $0xcc] sm:$0xf]
  %v99 = vld [vmem:[%s1 + $0xd0] sm:$0xf]
  %v100 = vld [vmem:[%s1 + $0xd4] sm:$0xf]
  %v101 = vld [vmem:[%s1 + $0xd8] sm:$0xf]
  %v102 = vld [vmem:[%s1 + $0xdc] sm:$0xf]
  %v103 = vld [vmem:[%s1 + $0xe0] sm:$0xf]
  %v104 = vld [vmem:[%s1 + $0xe4] sm:$0xf]
  %v105 = vld [vmem:[%s1 + $0xe8] sm:$0xf]
  %v106 = vld [vmem:[%s1 + $0xec] sm:$0xf]
  %v107 = vld [vmem:[%s1 + $0xf0] sm:$0xf]
  %v108 = vld [vmem:[%s1 + $0xf4] sm:$0xf]
  %v109 = vld [vmem:[%s1 + $0xf8] sm:$0xf]
  %v110 = vld [vmem:[%s1 + $0xfc] sm:$0xf]
  %v111 = vld [vmem:[%s1 + $0x100] sm:$0xf]
  %v112 = vld [vmem:[%s1 + $0x104] sm:$0xf]
  %v113 = vld [vmem:[%s1 + $0x108] sm:$0xf]
  %v114 = vld [vmem:[%s1 + $0x10c] sm:$0xf]
  %v115 = vld [vmem:[%s1 + $0x110] sm:$0xf]
  %v116 = vld [vmem:[%s1 + $0x114] sm:$0xf]
  %v117 = vld [vmem:[%s1 + $0x118] sm:$0xf]
  %v118 = vld [vmem:[%s1 + $0x11c] sm:$0xf]
  %v119 = vld [vmem:[%s1 + $0x120] sm:$0xf]
  %v120 = vld [vmem:[%s1 + $0x124] sm:$0xf]
  %v121 = vld [vmem:[%s1 + $0x128] sm:$0xf]
  %v122 = vld [vmem:[%s1 + $0x12c] sm:$0xf]
  %v123 = vld [vmem:[%s1 + $0x130] sm:$0xf]
  %v124 = vld [vmem:[%s1 + $0x134] sm:$0xf]
  %v125 = vld [vmem:[%s1 + $0x138] sm:$0xf]
  %v126 = vld [vmem:[%s1 + $0x13c] sm:$0xf]
  %v127 = vld [vmem:[%s1 + $0x140] sm:$0xf]
  %v128 = vld [vmem:[%s1 + $0x144] sm:$0xf]
  %v129 = vld [vmem:[%s1 + $0x148] sm:$0xf]
  %v130 = vld [vmem:[%s1 + $0x14c] sm:$0xf]
  %v131 = vld [vmem:[%s1 + $0x150] sm:$0xf]
  %v132 = vld [vmem:[%s1 + $0x154] sm:$0xf]
  %v133 = vld [vmem:[%s1 + $0x158] sm:$0xf]
  %v134 = vld [vmem:[%s1 + $0x15c] sm:$0xf]
  %v135 = vld [vmem:[%s1 + $0x160] sm:$0xf]
  %v136 = vld [vmem:[%s1 + $0x164] sm:$0xf]
  %v137 = vld [vmem:[%s1 + $0x168] sm:$0xf]
  %v138 = vld [vmem:[%s1 + $0x16c] sm:$0xf]
  %v139 = vld [vmem:[%s1 + $0x170] sm:$0xf]
  %v140 = vld [vmem:[%s1 + $0x174] sm:$0xf]
  %v141 = vld [vmem:[%s1 + $0x178] sm:$0xf]
  %v142 = vld [vmem:[%s1 + $0x17c] sm:$0xf]
  %v143 = vld [vmem:[%s1 + $0x180] sm:$0xf]
  %v144 = vld [vmem:[%s1 + $0x184] sm:$0xf]
  %v145 = vld [vmem:[%s1 + $0x188] sm:$0xf]
  %v146 = vld [vmem:[%s1 + $0x18c] sm:$0xf]
  %v147 = vld [vmem:[%s1 + $0x190] sm:$0xf]
  %v148 = vld [vmem:[%s1 + $0x194] sm:$0xf]
  %v149 = vld [vmem:[%s1 + $0x198] sm:$0xf]
  %v150 = vld [vmem:[%s1 + $0x19c] sm:$0xf]
  %v151 = vld [vmem:[%s1 + $0x1a0] sm:$0xf]
  %v152 = vld [vmem:[%s1 + $0x1a4] sm:$0xf]
  %v153 = vld [vmem:[%s1 + $0x1a8] sm:$0xf]
  %v154 = vld [vmem:[%s1 + $0x1ac] sm:$0xf]
  %v155 = vld [vmem:[%s1 + $0x1b0] sm:$0xf]
  %v156 = vld [vmem:[%s1 + $0x1b4] sm:$0xf]
  %v157 = vld [vmem:[%s1 + $0x1b8] sm:$0xf]
  %v158 = vld [vmem:[%s1 + $0x1bc] sm:$0xf]
  %v159 = vld [vmem:[%s2] sm:$0x1]
  %v161 = vlaneseq
  %v162 = vshrl.u32 %v161, 7
  %v163 = vsub.s32 0, %v162
  %v164 = vrot.slane %v159, %v163
  %v198 = vunpack.c.l.b16 %v15
  %v199 = vunpack.c.h.b16 %v15
  %v200 = vunpack.c.l.b16 %v16
  %v201 = vunpack.c.h.b16 %v16
  %v202 = vunpack.c.l.b16 %v17
  %v203 = vunpack.c.h.b16 %v17
  %v204 = vunpack.c.l.b16 %v18
  %v205 = vunpack.c.l.b16 %v19
  %v206 = vunpack.c.h.b16 %v19
  %v207 = vunpack.c.l.b16 %v20
  %v208 = vunpack.c.h.b16 %v20
  %v209 = vunpack.c.l.b16 %v21
  %v210 = vunpack.c.h.b16 %v21
  %v211 = vunpack.c.l.b16 %v22
  %v212 = vunpack.c.l.b16 %v23
  %v213 = vunpack.c.h.b16 %v23
  %v214 = vunpack.c.l.b16 %v24
  %v215 = vunpack.c.h.b16 %v24
  %v216 = vunpack.c.l.b16 %v25
  %v217 = vunpack.c.h.b16 %v25
  %v218 = vunpack.c.l.b16 %v26
  %v219 = vunpack.c.l.b16 %v27
  %v220 = vunpack.c.h.b16 %v27
  %v221 = vunpack.c.l.b16 %v28
  %v222 = vunpack.c.h.b16 %v28
  %v223 = vunpack.c.l.b16 %v29
  %v224 = vunpack.c.h.b16 %v29
  %v225 = vunpack.c.l.b16 %v30
  %v226 = vunpack.c.l.b16 %v31
  %v227 = vunpack.c.h.b16 %v31
  %v228 = vunpack.c.l.b16 %v32
  %v229 = vunpack.c.h.b16 %v32
  %v230 = vunpack.c.l.b16 %v33
  %v231 = vunpack.c.h.b16 %v33
  %v232 = vunpack.c.l.b16 %v34
  %v233 = vunpack.c.l.b16 %v35
  %v234 = vunpack.c.h.b16 %v35
  %v235 = vunpack.c.l.b16 %v36
  %v236 = vunpack.c.h.b16 %v36
  %v237 = vunpack.c.l.b16 %v37
  %v238 = vunpack.c.h.b16 %v37
  %v239 = vunpack.c.l.b16 %v38
  %v240 = vunpack.c.l.b16 %v39
  %v241 = vunpack.c.h.b16 %v39
  %v242 = vunpack.c.l.b16 %v40
  %v243 = vunpack.c.h.b16 %v40
  %v244 = vunpack.c.l.b16 %v41
  %v245 = vunpack.c.h.b16 %v41
  %v246 = vunpack.c.l.b16 %v42
  %v247 = vunpack.c.l.b16 %v43
  %v248 = vunpack.c.h.b16 %v43
  %v249 = vunpack.c.l.b16 %v44
  %v250 = vunpack.c.h.b16 %v44
  %v251 = vunpack.c.l.b16 %v45
  %v252 = vunpack.c.h.b16 %v45
  %v253 = vunpack.c.l.b16 %v46
  %v254 = vpack.c.b16 %v205, %v198
  %v255 = vpack.c.b16 %v206, %v199
  %v256 = vpack.c.b16 %v207, %v200
  %v257 = vpack.c.b16 %v208, %v201
  %v258 = vpack.c.b16 %v209, %v202
  %v259 = vpack.c.b16 %v210, %v203
  %v260 = vpack.c.b16 %v211, %v204
  %v261 = vpack.c.b16 %v219, %v212
  %v262 = vpack.c.b16 %v220, %v213
  %v263 = vpack.c.b16 %v221, %v214
  %v264 = vpack.c.b16 %v222, %v215
  %v265 = vpack.c.b16 %v223, %v216
  %v266 = vpack.c.b16 %v224, %v217
  %v267 = vpack.c.b16 %v225, %v218
  %v268 = vpack.c.b16 %v233, %v226
  %v269 = vpack.c.b16 %v234, %v227
  %v270 = vpack.c.b16 %v235, %v228
  %v271 = vpack.c.b16 %v236, %v229
  %v272 = vpack.c.b16 %v237, %v230
  %v273 = vpack.c.b16 %v238, %v231
  %v274 = vpack.c.b16 %v239, %v232
  %v275 = vpack.c.b16 %v247, %v240
  %v276 = vpack.c.b16 %v248, %v241
  %v277 = vpack.c.b16 %v249, %v242
  %v278 = vpack.c.b16 %v250, %v243
  %v279 = vpack.c.b16 %v251, %v244
  %v280 = vpack.c.b16 %v252, %v245
  %v281 = vpack.c.b16 %v253, %v246
  %v422 = vunpack.c.l.b16 %v47
  %v423 = vunpack.c.l.b16 %v48
  %v424 = vunpack.c.l.b16 %v49
  %v425 = vunpack.c.l.b16 %v50
  %v426 = vunpack.c.l.b16 %v51
  %v427 = vunpack.c.l.b16 %v52
  %v428 = vunpack.c.l.b16 %v53
  %v429 = vunpack.c.l.b16 %v54
  %v430 = vunpack.c.l.b16 %v55
  %v431 = vunpack.c.l.b16 %v56
  %v432 = vunpack.c.l.b16 %v57
  %v433 = vunpack.c.l.b16 %v58
  %v434 = vunpack.c.l.b16 %v59
  %v435 = vunpack.c.l.b16 %v60
  %v436 = vunpack.c.l.b16 %v61
  %v437 = vunpack.c.l.b16 %v62
  %v438 = vunpack.c.l.b16 %v63
  %v439 = vunpack.c.l.b16 %v64
  %v440 = vunpack.c.l.b16 %v65
  %v441 = vunpack.c.l.b16 %v66
  %v442 = vunpack.c.l.b16 %v67
  %v443 = vunpack.c.l.b16 %v68
  %v444 = vunpack.c.l.b16 %v69
  %v445 = vunpack.c.l.b16 %v70
  %v446 = vunpack.c.l.b16 %v71
  %v447 = vunpack.c.l.b16 %v72
  %v448 = vunpack.c.l.b16 %v73
  %v449 = vunpack.c.l.b16 %v74
  %v450 = vunpack.c.l.b16 %v75
  %v451 = vunpack.c.l.b16 %v76
  %v452 = vunpack.c.l.b16 %v77
  %v453 = vunpack.c.l.b16 %v78
  %v454 = vunpack.c.l.b16 %v79
  %v455 = vunpack.c.l.b16 %v80
  %v456 = vunpack.c.l.b16 %v81
  %v457 = vunpack.c.l.b16 %v82
  %v458 = vunpack.c.l.b16 %v83
  %v459 = vunpack.c.l.b16 %v84
  %v460 = vunpack.c.l.b16 %v85
  %v461 = vunpack.c.l.b16 %v86
  %v462 = vunpack.c.l.b16 %v87
  %v463 = vunpack.c.l.b16 %v88
  %v464 = vunpack.c.l.b16 %v89
  %v465 = vunpack.c.l.b16 %v90
  %v466 = vunpack.c.l.b16 %v91
  %v467 = vunpack.c.l.b16 %v92
  %v468 = vunpack.c.l.b16 %v93
  %v469 = vunpack.c.l.b16 %v94
  %v470 = vunpack.c.l.b16 %v95
  %v471 = vunpack.c.l.b16 %v96
  %v472 = vunpack.c.l.b16 %v97
  %v473 = vunpack.c.l.b16 %v98
  %v474 = vunpack.c.l.b16 %v99
  %v475 = vunpack.c.l.b16 %v100
  %v476 = vunpack.c.l.b16 %v101
  %v477 = vunpack.c.l.b16 %v102
  %v478 = vunpack.c.l.b16 %v103
  %v479 = vunpack.c.l.b16 %v104
  %v480 = vunpack.c.l.b16 %v105
  %v481 = vunpack.c.l.b16 %v106
  %v482 = vunpack.c.l.b16 %v107
  %v483 = vunpack.c.l.b16 %v108
  %v484 = vunpack.c.l.b16 %v109
  %v485 = vunpack.c.l.b16 %v110
  %v486 = vunpack.c.l.b16 %v111
  %v487 = vunpack.c.l.b16 %v112
  %v488 = vunpack.c.l.b16 %v113
  %v489 = vunpack.c.l.b16 %v114
  %v490 = vunpack.c.l.b16 %v115
  %v491 = vunpack.c.l.b16 %v116
  %v492 = vunpack.c.l.b16 %v117
  %v493 = vunpack.c.l.b16 %v118
  %v494 = vunpack.c.l.b16 %v119
  %v495 = vunpack.c.l.b16 %v120
  %v496 = vunpack.c.l.b16 %v121
  %v497 = vunpack.c.l.b16 %v122
  %v498 = vunpack.c.l.b16 %v123
  %v499 = vunpack.c.l.b16 %v124
  %v500 = vunpack.c.l.b16 %v125
  %v501 = vunpack.c.l.b16 %v126
  %v502 = vunpack.c.l.b16 %v127
  %v503 = vunpack.c.l.b16 %v128
  %v504 = vunpack.c.l.b16 %v129
  %v505 = vunpack.c.l.b16 %v130
  %v506 = vunpack.c.l.b16 %v131
  %v507 = vunpack.c.l.b16 %v132
  %v508 = vunpack.c.l.b16 %v133
  %v509 = vunpack.c.l.b16 %v134
  %v510 = vunpack.c.l.b16 %v135
  %v511 = vunpack.c.l.b16 %v136
  %v512 = vunpack.c.l.b16 %v137
  %v513 = vunpack.c.l.b16 %v138
  %v514 = vunpack.c.l.b16 %v139
  %v515 = vunpack.c.l.b16 %v140
  %v516 = vunpack.c.l.b16 %v141
  %v517 = vunpack.c.l.b16 %v142
  %v518 = vunpack.c.l.b16 %v143
  %v519 = vunpack.c.l.b16 %v144
  %v520 = vunpack.c.l.b16 %v145
  %v521 = vunpack.c.l.b16 %v146
  %v522 = vunpack.c.l.b16 %v147
  %v523 = vunpack.c.l.b16 %v148
  %v524 = vunpack.c.l.b16 %v149
  %v525 = vunpack.c.l.b16 %v150
  %v526 = vunpack.c.l.b16 %v151
  %v527 = vunpack.c.l.b16 %v152
  %v528 = vunpack.c.l.b16 %v153
  %v529 = vunpack.c.l.b16 %v154
  %v530 = vunpack.c.l.b16 %v155
  %v531 = vunpack.c.l.b16 %v156
  %v532 = vunpack.c.l.b16 %v157
  %v533 = vunpack.c.l.b16 %v158
  %v534 = vpack.c.b16 %v423, %v422
  %v535 = vpack.c.b16 %v425, %v424
  %v536 = vpack.c.b16 %v427, %v426
  %v537 = vpack.c.b16 %v429, %v428
  %v538 = vpack.c.b16 %v431, %v430
  %v539 = vpack.c.b16 %v433, %v432
  %v540 = vpack.c.b16 %v435, %v434
  %v541 = vpack.c.b16 %v437, %v436
  %v542 = vpack.c.b16 %v439, %v438
  %v543 = vpack.c.b16 %v441, %v440
  %v544 = vpack.c.b16 %v443, %v442
  %v545 = vpack.c.b16 %v445, %v444
  %v546 = vpack.c.b16 %v447, %v446
  %v547 = vpack.c.b16 %v449, %v448
  %v548 = vpack.c.b16 %v451, %v450
  %v549 = vpack.c.b16 %v453, %v452
  %v550 = vpack.c.b16 %v455, %v454
  %v551 = vpack.c.b16 %v457, %v456
  %v552 = vpack.c.b16 %v459, %v458
  %v553 = vpack.c.b16 %v461, %v460
  %v554 = vpack.c.b16 %v463, %v462
  %v555 = vpack.c.b16 %v465, %v464
  %v556 = vpack.c.b16 %v467, %v466
  %v557 = vpack.c.b16 %v469, %v468
  %v558 = vpack.c.b16 %v471, %v470
  %v559 = vpack.c.b16 %v473, %v472
  %v560 = vpack.c.b16 %v475, %v474
  %v561 = vpack.c.b16 %v477, %v476
  %v562 = vpack.c.b16 %v479, %v478
  %v563 = vpack.c.b16 %v481, %v480
  %v564 = vpack.c.b16 %v483, %v482
  %v565 = vpack.c.b16 %v485, %v484
  %v566 = vpack.c.b16 %v487, %v486
  %v567 = vpack.c.b16 %v489, %v488
  %v568 = vpack.c.b16 %v491, %v490
  %v569 = vpack.c.b16 %v493, %v492
  %v570 = vpack.c.b16 %v495, %v494
  %v571 = vpack.c.b16 %v497, %v496
  %v572 = vpack.c.b16 %v499, %v498
  %v573 = vpack.c.b16 %v501, %v500
  %v574 = vpack.c.b16 %v503, %v502
  %v575 = vpack.c.b16 %v505, %v504
  %v576 = vpack.c.b16 %v507, %v506
  %v577 = vpack.c.b16 %v509, %v508
  %v578 = vpack.c.b16 %v511, %v510
  %v579 = vpack.c.b16 %v513, %v512
  %v580 = vpack.c.b16 %v515, %v514
  %v581 = vpack.c.b16 %v517, %v516
  %v582 = vpack.c.b16 %v519, %v518
  %v583 = vpack.c.b16 %v521, %v520
  %v584 = vpack.c.b16 %v523, %v522
  %v585 = vpack.c.b16 %v525, %v524
  %v586 = vpack.c.b16 %v527, %v526
  %v587 = vpack.c.b16 %v529, %v528
  %v588 = vpack.c.b16 %v531, %v530
  %v589 = vpack.c.b16 %v533, %v532
  %646 = vmatprep.subr.bf16.mxu0 0
  %647 = vmatpush1.bf16.msra.mxu0 %v534
  %648 = vmatprep.subr.bf16.mxu0 0
  %649 = vmatpush1.bf16.msra.mxu0 %v535
  %650 = vmatprep.subr.bf16.mxu0 0
  %651 = vmatpush1.bf16.msra.mxu0 %v536
  %652 = vmatprep.subr.bf16.mxu0 0
  %653 = vmatpush1.bf16.msra.mxu0 %v537
  %654 = vmatprep.subr.bf16.mxu0 0
  %655 = vmatpush1.bf16.msra.mxu0 %v538
  %656 = vmatprep.subr.bf16.mxu0 0
  %657 = vmatpush1.bf16.msra.mxu0 %v539
  %658 = vmatprep.subr.bf16.mxu0 0
  %659 = vmatpush1.bf16.msra.mxu0 %v540
  %660 = vmatprep.subr.bf16.mxu0 0
  %661 = vmatpush1.bf16.msra.mxu0 %v541
  %662 = vmatprep.subr.bf16.mxu0 0
  %663 = vmatpush1.bf16.msra.mxu0 %v542
  %664 = vmatprep.subr.bf16.mxu0 0
  %665 = vmatpush1.bf16.msra.mxu0 %v543
  %666 = vmatprep.subr.bf16.mxu0 0
  %667 = vmatpush1.bf16.msra.mxu0 %v544
  %668 = vmatprep.subr.bf16.mxu0 0
  %669 = vmatpush1.bf16.msra.mxu0 %v545
  %670 = vmatprep.subr.bf16.mxu0 0
  %671 = vmatpush1.bf16.msra.mxu0 %v546
  %672 = vmatprep.subr.bf16.mxu0 0
  %673 = vmatpush1.bf16.msra.mxu0 %v547
  %674 = vmatprep.subr.bf16.mxu0 0
  %675 = vmatpush1.bf16.msra.mxu0 %v548
  %676 = vmatprep.subr.bf16.mxu0 0
  %677 = vmatpush1.bf16.msra.mxu0 %v549
  %678 = vmatprep.mubr.bf16.mxu0 %v255
  %679 = vmatmul.mubr.bf16.gmra.mrb[0].mxu0 %v254
  %v680 = vpop.f32.mrb[0].mxu0
  %v681 = vadd.f32 %v164, %v680
  %v682 = vpop.f32.mrb[0].mxu0
  %v683 = vpop.f32.mrb[0].mxu0
  %v684 = vadd.f32 %v164, %v683
  %v685 = vpop.f32.mrb[0].mxu0
  %686 = vmatprep.mubr.bf16.mxu0 %v262
  %687 = vmatmul.mubr.bf16.gmra.mrb[0].mxu0 %v261
  %v688 = vpop.f32.mrb[0].mxu0
  %v689 = vadd.f32 %v164, %v688
  %v690 = vpop.f32.mrb[0].mxu0
  %v691 = vpop.f32.mrb[0].mxu0
  %v692 = vadd.f32 %v164, %v691
  %v693 = vpop.f32.mrb[0].mxu0
  %694 = vmatprep.mubr.bf16.mxu0 %v269
  %695 = vmatmul.mubr.bf16.gmra.mrb[0].mxu0 %v268
  %v696 = vpop.f32.mrb[0].mxu0
  %v697 = vadd.f32 %v164, %v696
  %v698 = vpop.f32.mrb[0].mxu0
  %v699 = vpop.f32.mrb[0].mxu0
  %v700 = vadd.f32 %v164, %v699
  %v701 = vpop.f32.mrb[0].mxu0
  %702 = vmatprep.mubr.bf16.mxu0 %v276
  %703 = vmatmul.mubr.bf16.gmra.mrb[0].mxu0 %v275
  %v704 = vpop.f32.mrb[0].mxu0
  %v705 = vadd.f32 %v164, %v704
  %v706 = vpop.f32.mrb[0].mxu0
  %v707 = vpop.f32.mrb[0].mxu0
  %v708 = vadd.f32 %v164, %v707
  %v709 = vpop.f32.mrb[0].mxu0
  %710 = vdwg.mxu0
  %711 = vmatprep.subr.bf16.mxu0 0
  %712 = vmatpush1.bf16.msra.mxu0 %v550
  %713 = vmatprep.subr.bf16.mxu0 0
  %714 = vmatpush1.bf16.msra.mxu0 %v551
  %715 = vmatprep.subr.bf16.mxu0 0
  %716 = vmatpush1.bf16.msra.mxu0 %v552
  %717 = vmatprep.subr.bf16.mxu0 0
  %718 = vmatpush1.bf16.msra.mxu0 %v553
  %719 = vmatprep.subr.bf16.mxu0 0
  %720 = vmatpush1.bf16.msra.mxu0 %v554
  %721 = vmatprep.subr.bf16.mxu0 0
  %722 = vmatpush1.bf16.msra.mxu0 %v555
  %723 = vmatprep.subr.bf16.mxu0 0
  %724 = vmatpush1.bf16.msra.mxu0 %v556
  %725 = vmatprep.subr.bf16.mxu0 0
  %726 = vmatpush1.bf16.msra.mxu0 %v557
  %727 = vmatprep.subr.bf16.mxu0 0
  %728 = vmatpush1.bf16.msra.mxu0 %v558
  %729 = vmatprep.subr.bf16.mxu0 0
  %730 = vmatpush1.bf16.msra.mxu0 %v559
  %731 = vmatprep.subr.bf16.mxu0 0
  %732 = vmatpush1.bf16.msra.mxu0 %v560
  %733 = vmatprep.subr.bf16.mxu0 0
  %734 = vmatpush1.bf16.msra.mxu0 %v561
  %735 = vmatprep.subr.bf16.mxu0 0
  %736 = vmatpush1.bf16.msra.mxu0 %v562
  %737 = vmatprep.subr.bf16.mxu0 0
  %738 = vmatpush1.bf16.msra.mxu0 %v563
  %739 = vmatprep.subr.bf16.mxu0 0
  %740 = vmatpush1.bf16.msra.mxu0 %v564
  %741 = vmatprep.subr.bf16.mxu0 0
  %742 = vmatpush1.bf16.msra.mxu0 %v565
  %743 = vmatprep.mubr.bf16.mxu0 %v257
  %744 = vmatmul.mubr.bf16.gmra.mrb[0].mxu0 %v256
  %v745 = vpop.f32.mrb[0].mxu0
  %v746 = vadd.f32 %v681, %v745
  %v747 = vpop.f32.mrb[0].mxu0
  %v748 = vpop.f32.mrb[0].mxu0
  %v749 = vadd.f32 %v684, %v748
  %v750 = vpop.f32.mrb[0].mxu0
  %751 = vmatprep.mubr.bf16.mxu0 %v264
  %752 = vmatmul.mubr.bf16.gmra.mrb[0].mxu0 %v263
  %v753 = vpop.f32.mrb[0].mxu0
  %v754 = vadd.f32 %v689, %v753
  %v755 = vpop.f32.mrb[0].mxu0
  %v756 = vpop.f32.mrb[0].mxu0
  %v757 = vadd.f32 %v692, %v756
  %v758 = vpop.f32.mrb[0].mxu0
  %759 = vmatprep.mubr.bf16.mxu0 %v271
  %760 = vmatmul.mubr.bf16.gmra.mrb[0].mxu0 %v270
  %v761 = vpop.f32.mrb[0].mxu0
  %v762 = vadd.f32 %v697, %v761
  %v763 = vpop.f32.mrb[0].mxu0
  %v764 = vpop.f32.mrb[0].mxu0
  %v765 = vadd.f32 %v700, %v764
  %v766 = vpop.f32.mrb[0].mxu0
  %767 = vmatprep.mubr.bf16.mxu0 %v278
  %768 = vmatmul.mubr.bf16.gmra.mrb[0].mxu0 %v277
  %v769 = vpop.f32.mrb[0].mxu0
  %v770 = vadd.f32 %v705, %v769
  %v771 = vpop.f32.mrb[0].mxu0
  %v772 = vpop.f32.mrb[0].mxu0
  %v773 = vadd.f32 %v708, %v772
  %v774 = vpop.f32.mrb[0].mxu0
  %775 = vdwg.mxu0
  %776 = vmatprep.subr.bf16.mxu0 0
  %777 = vmatpush1.bf16.msra.mxu0 %v566
  %778 = vmatprep.subr.bf16.mxu0 0
  %779 = vmatpush1.bf16.msra.mxu0 %v567
  %780 = vmatprep.subr.bf16.mxu0 0
  %781 = vmatpush1.bf16.msra.mxu0 %v568
  %782 = vmatprep.subr.bf16.mxu0 0
  %783 = vmatpush1.bf16.msra.mxu0 %v569
  %784 = vmatprep.subr.bf16.mxu0 0
  %785 = vmatpush1.bf16.msra.mxu0 %v570
  %786 = vmatprep.subr.bf16.mxu0 0
  %787 = vmatpush1.bf16.msra.mxu0 %v571
  %788 = vmatprep.subr.bf16.mxu0 0
  %789 = vmatpush1.bf16.msra.mxu0 %v572
  %790 = vmatprep.subr.bf16.mxu0 0
  %791 = vmatpush1.bf16.msra.mxu0 %v573
  %792 = vmatprep.subr.bf16.mxu0 0
  %793 = vmatpush1.bf16.msra.mxu0 %v574
  %794 = vmatprep.subr.bf16.mxu0 0
  %795 = vmatpush1.bf16.msra.mxu0 %v575
  %796 = vmatprep.subr.bf16.mxu0 0
  %797 = vmatpush1.bf16.msra.mxu0 %v576
  %798 = vmatprep.subr.bf16.mxu0 0
  %799 = vmatpush1.bf16.msra.mxu0 %v577
  %800 = vmatprep.subr.bf16.mxu0 0
  %801 = vmatpush1.bf16.msra.mxu0 %v578
  %802 = vmatprep.subr.bf16.mxu0 0
  %803 = vmatpush1.bf16.msra.mxu0 %v579
  %804 = vmatprep.subr.bf16.mxu0 0
  %805 = vmatpush1.bf16.msra.mxu0 %v580
  %806 = vmatprep.subr.bf16.mxu0 0
  %807 = vmatpush1.bf16.msra.mxu0 %v581
  %808 = vmatprep.mubr.bf16.mxu0 %v259
  %809 = vmatmul.mubr.bf16.gmra.mrb[0].mxu0 %v258
  %v810 = vpop.f32.mrb[0].mxu0
  %v811 = vadd.f32 %v746, %v810
  %v812 = vpop.f32.mrb[0].mxu0
  %v813 = vpop.f32.mrb[0].mxu0
  %v814 = vadd.f32 %v749, %v813
  %v815 = vpop.f32.mrb[0].mxu0
  %816 = vmatprep.mubr.bf16.mxu0 %v266
  %817 = vmatmul.mubr.bf16.gmra.mrb[0].mxu0 %v265
  %v818 = vpop.f32.mrb[0].mxu0
  %v819 = vadd.f32 %v754, %v818
  %v820 = vpop.f32.mrb[0].mxu0
  %v821 = vpop.f32.mrb[0].mxu0
  %v822 = vadd.f32 %v757, %v821
  %v823 = vpop.f32.mrb[0].mxu0
  %824 = vmatprep.mubr.bf16.mxu0 %v273
  %825 = vmatmul.mubr.bf16.gmra.mrb[0].mxu0 %v272
  %v826 = vpop.f32.mrb[0].mxu0
  %v827 = vadd.f32 %v762, %v826
  %v828 = vpop.f32.mrb[0].mxu0
  %v829 = vpop.f32.mrb[0].mxu0
  %v830 = vadd.f32 %v765, %v829
  %v831 = vpop.f32.mrb[0].mxu0
  %832 = vmatprep.mubr.bf16.mxu0 %v280
  %833 = vmatmul.mubr.bf16.gmra.mrb[0].mxu0 %v279
  %v834 = vpop.f32.mrb[0].mxu0
  %v835 = vadd.f32 %v770, %v834
  %v836 = vpop.f32.mrb[0].mxu0
  %v837 = vpop.f32.mrb[0].mxu0
  %v838 = vadd.f32 %v773, %v837
  %v839 = vpop.f32.mrb[0].mxu0
  %840 = vdwg.mxu0
  %841 = vmatprep.subr.bf16.mxu0 0
  %842 = vmatpush1.bf16.msra.mxu0 %v582
  %843 = vmatprep.subr.bf16.mxu0 0
  %844 = vmatpush1.bf16.msra.mxu0 %v583
  %845 = vmatprep.subr.bf16.mxu0 0
  %846 = vmatpush1.bf16.msra.mxu0 %v584
  %847 = vmatprep.subr.bf16.mxu0 0
  %848 = vmatpush1.bf16.msra.mxu0 %v585
  %849 = vmatprep.subr.bf16.mxu0 0
  %850 = vmatpush1.bf16.msra.mxu0 %v586
  %851 = vmatprep.subr.bf16.mxu0 0
  %852 = vmatpush1.bf16.msra.mxu0 %v587
  %853 = vmatprep.subr.bf16.mxu0 0
  %854 = vmatpush1.bf16.msra.mxu0 %v588
  %855 = vmatprep.subr.bf16.mxu0 0
  %856 = vmatpush1.bf16.msra.mxu0 %v589
  %857 = vmatprep.subr.bf16.mxu0 0
  %858 = vmatpush1.bf16.msra.mxu0 0
  %859 = vmatprep.subr.bf16.mxu0 0
  %860 = vmatpush1.bf16.msra.mxu0 0
  %861 = vmatprep.subr.bf16.mxu0 0
  %862 = vmatpush1.bf16.msra.mxu0 0
  %863 = vmatprep.subr.bf16.mxu0 0
  %864 = vmatpush1.bf16.msra.mxu0 0
  %865 = vmatprep.subr.bf16.mxu0 0
  %866 = vmatpush1.bf16.msra.mxu0 0
  %867 = vmatprep.subr.bf16.mxu0 0
  %868 = vmatpush1.bf16.msra.mxu0 0
  %869 = vmatprep.subr.bf16.mxu0 0
  %870 = vmatpush1.bf16.msra.mxu0 0
  %871 = vmatprep.subr.bf16.mxu0 0
  %872 = vmatpush1.bf16.msra.mxu0 0
  %873 = vmatprep.mubr.bf16.mxu0 0
  %874 = vmatmul.mubr.bf16.gmra.mrb[0].mxu0 %v260
  %v875 = vpop.f32.mrb[0].mxu0
  %v876 = vadd.f32 %v811, %v875
  %v877 = vpop.f32.mrb[0].mxu0
  %v878 = vpop.f32.mrb[0].mxu0
  %v879 = vadd.f32 %v814, %v878
  %v880 = vpop.f32.mrb[0].mxu0
  %881 = vmatprep.mubr.bf16.mxu0 0
  %882 = vmatmul.mubr.bf16.gmra.mrb[0].mxu0 %v267
  %v883 = vpop.f32.mrb[0].mxu0
  %v884 = vadd.f32 %v819, %v883
  %v885 = vpop.f32.mrb[0].mxu0
  %v886 = vpop.f32.mrb[0].mxu0
  %v887 = vadd.f32 %v822, %v886
  %v888 = vpop.f32.mrb[0].mxu0
  %889 = vmatprep.mubr.bf16.mxu0 0
  %890 = vmatmul.mubr.bf16.gmra.mrb[0].mxu0 %v274
  %v891 = vpop.f32.mrb[0].mxu0
  %v892 = vadd.f32 %v827, %v891
  %v893 = vpop.f32.mrb[0].mxu0
  %v894 = vpop.f32.mrb[0].mxu0
  %v895 = vadd.f32 %v830, %v894
  %v896 = vpop.f32.mrb[0].mxu0
  %897 = vmatprep.mubr.bf16.mxu0 0
  %898 = vmatmul.mubr.bf16.gmra.mrb[0].mxu0 %v281
  %v899 = vpop.f32.mrb[0].mxu0
  %v900 = vadd.f32 %v835, %v899
  %v901 = vpop.f32.mrb[0].mxu0
  %v902 = vpop.f32.mrb[0].mxu0
  %v903 = vadd.f32 %v838, %v902
  %v904 = vpop.f32.mrb[0].mxu0
  %905 = vdwg.mxu0
  %906 = vst [vmem:[%s3] sm:$0xff] %v876
  %907 = vst [vmem:[%s3 + $0x8] sm:$0xff] %v879
  %908 = vst [vmem:[%s3 + $0x10] sm:$0xff] %v884
  %909 = vst [vmem:[%s3 + $0x18] sm:$0xff] %v887
  %910 = vst [vmem:[%s3 + $0x20] sm:$0xff] %v892
  %911 = vst [vmem:[%s3 + $0x28] sm:$0xff] %v895
  %912 = vst [vmem:[%s3 + $0x30] sm:$0xff] %v900
  %913 = vst [vmem:[%s3 + $0x38] sm:$0xff] %v903
  // Predicated region
  $region14: #{multi_head_tcdc_self_sg_attention.2} parent=0 // pred_check
    _
  $region15: #{multi_head_tcdc_self_sg_attention.2} parent=0 // pred_check_branch
    %915 = sbr.rel (0) target = $region17
  $region16: #{multi_head_tcdc_self_sg_attention.2} parent=0 // pred_region
    _
  $region17: #{multi_head_tcdc_self_sg_attention.2} parent=0 // pred_fallthru
    _
  // Predicated region
  $region18: #{multi_head_tcdc_self_sg_attention.2} parent=0 // pred_check
    _
  $region19: #{multi_head_tcdc_self_sg_attention.2} parent=0 // pred_check_branch
    %917 = sbr.rel (0) target = $region21
  $region20: #{multi_head_tcdc_self_sg_attention.2} parent=0 // pred_region
    _
  $region21: #{multi_head_tcdc_self_sg_attention.2} parent=0 // pred_fallthru
    _

// kernel: multi_head_tcdc_self_sg_attention.3
$region0: #{multi_head_tcdc_self_sg_attention.3}
  #allocation0 [shape = 'u32[]', space=smem, size = 0x4, offset = 0x4, fixed_abs, tag = 'smem constant byte address 0x4 - core index']
  #allocation1 [shape = 'u32[144,128]{1,0:T(1,128)}', space=vmem, size = 0x12000, scoped, tag = 'internal scratch']
  %s0 = inlined_call_operand.vmem [shape: f32[2,32,128], index: 0, kind: input, shape index: {}]
  %s1 = inlined_call_operand.vmem [shape: f32[4,32], index: 1, kind: input, shape index: {}]
  %s2 = inlined_call_operand.vmem [shape: bf16[32,32], index: 2, kind: input, shape index: {}]
  %s3 = inlined_call_operand.vmem [shape: f32[1,32], index: 3, kind: input, shape index: {}]
  %s4 = inlined_call_operand.hbm [shape: f32[2,32,32], index: 4, kind: output, shape index: {}]
  %s5 = sld [smem:[#allocation0]]
  $region49: #{multi_head_tcdc_self_sg_attention.3} parent=0
    _
  %s7 = ssub.s32 1, %s5
  %s8 = scalar_select 0, %s7, %s5
  $region1: #{multi_head_tcdc_self_sg_attention.3} parent=0
    #allocation2 [shape = 'u8[32768]{0}', space=vmem, size = 0x8000, scoped, tag = 'output window, operand 0']
    #allocation3 [shape = 's32[2]{0}', space=sflag, size = 0x8, scoped, tag = 'scoped memory for multi_head_tcdc_self_sg_attention.3']
    %9 = vsyncpa [#allocation3], 0
    %s10 = scalar_lea.sflag [#allocation3], 1
    %11 = vsyncpa %s10, 0
    loop: start=0, step=1, limit=4
    $region2: #{multi_head_tcdc_self_sg_attention.3} parent=1 // loop_pre_header
      _
    $region3: #{multi_head_tcdc_self_sg_attention.3} parent=1 // loop_header
      %s13 = sphi 0, %s17
      %p14 = scmp.ge.s32.totalorder %s13, 4
      %s23 = sphi 0, %s25
      %s26 = sphi 0, %s23
      %s27 = sphi 0, %s26
      %s43 = sphi 0, %s27
      %s47 = sphi 0, %s47
      %s49 = sphi 0, %s47
      %s50 = sphi 0, %s49
      %s64 = sphi 0, %s50
      %s68 = sphi 0, %s68
      %s70 = sphi 0, %s68
      %s71 = sphi 0, %s70
      %s85 = sphi 0, %s71
      %s89 = sphi 0, %s89
      %s91 = sphi 0, %s89
      %s92 = sphi 0, %s91
      %s106 = sphi 0, %s92
      %s112 = sphi 0, %s114
      %s115 = sphi 0, %s112
      %s116 = sphi 0, %s115
      %s132 = sphi 0, %s116
    $region4: #{multi_head_tcdc_self_sg_attention.3} parent=1 // loop_header_branch
      %16 = sbr.rel (%p14) target = $region8
    $region5: #{multi_head_tcdc_self_sg_attention.3} parent=1 // loop_body
      %s18 = ssub.s32 %s13, 1
      %s19 = ssub.s32 %s13, 2
      %s20 = sadd.s32 %s13, 1
      %s21 = ssub.s32 %s13, %s20
      %p22 = scmp.eq.s32.totalorder %s21, 0
      %s24 = sadd.s32 %s23, 1
      %s25 = scalar_select %p22, %s23, %s24
      %p28 = pneg %p22
      %p29 = scmp.eq.s32.totalorder %s13, 1
      %p30 = por %p28, %p29
      %p31 = scmp.ne.s32.totalorder %s23, %s26
      %p32 = scmp.eq.s32.totalorder %s13, 0
      %p33 = por %p31, %p32
      %p34 = scmp.ne.s32.totalorder %s23, %s26
      %p35 = scmp.eq.s32.totalorder %s18, 1
      %p36 = por %p34, %p35
      %p37 = scmp.ne.s32.totalorder %s26, %s27
      %p38 = scmp.eq.s32.totalorder %s18, 0
      %p39 = por %p37, %p38
      %p40 = scmp.ne.s32.totalorder %s26, %s27
      %p41 = scmp.eq.s32.totalorder %s19, 1
      %p42 = por %p40, %p41
      %p44 = scmp.ne.s32.totalorder %s27, %s43
      %p45 = scmp.eq.s32.totalorder %s19, 0
      %p46 = por %p44, %p45
      %s48 = sadd.s32 %s47, 1
      %p51 = scmp.eq.s32.totalorder %s13, 1
      %p52 = scmp.ne.s32.totalorder %s47, %s49
      %p53 = scmp.eq.s32.totalorder %s13, 0
      %p54 = por %p52, %p53
      %p55 = scmp.ne.s32.totalorder %s47, %s49
      %p56 = scmp.eq.s32.totalorder %s18, 1
      %p57 = por %p55, %p56
      %p58 = scmp.ne.s32.totalorder %s49, %s50
      %p59 = scmp.eq.s32.totalorder %s18, 0
      %p60 = por %p58, %p59
      %p61 = scmp.ne.s32.totalorder %s49, %s50
      %p62 = scmp.eq.s32.totalorder %s19, 1
      %p63 = por %p61, %p62
      %p65 = scmp.ne.s32.totalorder %s50, %s64
      %p66 = scmp.eq.s32.totalorder %s19, 0
      %p67 = por %p65, %p66
      %s69 = sadd.s32 %s68, 1
      %p72 = scmp.eq.s32.totalorder %s13, 1
      %p73 = scmp.ne.s32.totalorder %s68, %s70
      %p74 = scmp.eq.s32.totalorder %s13, 0
      %p75 = por %p73, %p74
      %p76 = scmp.ne.s32.totalorder %s68, %s70
      %p77 = scmp.eq.s32.totalorder %s18, 1
      %p78 = por %p76, %p77
      %p79 = scmp.ne.s32.totalorder %s70, %s71
      %p80 = scmp.eq.s32.totalorder %s18, 0
      %p81 = por %p79, %p80
      %p82 = scmp.ne.s32.totalorder %s70, %s71
      %p83 = scmp.eq.s32.totalorder %s19, 1
      %p84 = por %p82, %p83
      %p86 = scmp.ne.s32.totalorder %s71, %s85
      %p87 = scmp.eq.s32.totalorder %s19, 0
      %p88 = por %p86, %p87
      %s90 = sadd.s32 %s89, 1
      %p93 = scmp.eq.s32.totalorder %s13, 1
      %p94 = scmp.ne.s32.totalorder %s89, %s91
      %p95 = scmp.eq.s32.totalorder %s13, 0
      %p96 = por %p94, %p95
      %p97 = scmp.ne.s32.totalorder %s89, %s91
      %p98 = scmp.eq.s32.totalorder %s18, 1
      %p99 = por %p97, %p98
      %p100 = scmp.ne.s32.totalorder %s91, %s92
      %p101 = scmp.eq.s32.totalorder %s18, 0
      %p102 = por %p100, %p101
      %p103 = scmp.ne.s32.totalorder %s91, %s92
      %p104 = scmp.eq.s32.totalorder %s19, 1
      %p105 = por %p103, %p104
      %p107 = scmp.ne.s32.totalorder %s92, %s106
      %p108 = scmp.eq.s32.totalorder %s19, 0
      %p109 = por %p107, %p108
      %s110 = ssub.s32 %s13, %s20
      %p111 = scmp.eq.s32.totalorder %s110, 0
      %s113 = sadd.s32 %s112, 1
      %s114 = scalar_select %p111, %s112, %s113
      %p117 = pneg %p111
      %p118 = scmp.eq.s32.totalorder %s13, 1
      %p119 = por %p117, %p118
      %p120 = scmp.ne.s32.totalorder %s112, %s115
      %p121 = scmp.eq.s32.totalorder %s13, 0
      %p122 = por %p120, %p121
      %p123 = scmp.ne.s32.totalorder %s112, %s115
      %p124 = scmp.eq.s32.totalorder %s18, 1
      %p125 = por %p123, %p124
      %p126 = scmp.ne.s32.totalorder %s115, %s116
      %p127 = scmp.eq.s32.totalorder %s18, 0
      %p128 = por %p126, %p127
      %p129 = scmp.ne.s32.totalorder %s115, %s116
      %p130 = scmp.eq.s32.totalorder %s19, 1
      %p131 = por %p129, %p130
      %p133 = scmp.ne.s32.totalorder %s116, %s132
      %p134 = scmp.eq.s32.totalorder %s19, 0
      %p135 = por %p133, %p134
      %p136 = scmp.le.s32.totalorder 1, %s13
      %p137 = scmp.lt.s32.totalorder %s13, 3
      %p138 = pnand %p136, %p137
      %p139 = pneg %p138
      // Predicated region
      $region9: #{multi_head_tcdc_self_sg_attention.3} parent=5 // pred_check
        _
      $region10: #{multi_head_tcdc_self_sg_attention.3} parent=5 // pred_check_branch
        %141 = sbr.rel (%p138) target = $region12
      $region11: #{multi_head_tcdc_self_sg_attention.3} parent=5 // pred_region
        %s142 = ssub.s32 %s13, 1
        // Predicated region
        $region13: #{multi_head_tcdc_self_sg_attention.3} parent=11 // pred_check
          %p143 = pneg %p60
        $region14: #{multi_head_tcdc_self_sg_attention.3} parent=11 // pred_check_branch
          %145 = sbr.rel (%p143) target = $region16
        $region15: #{multi_head_tcdc_self_sg_attention.3} parent=11 // pred_region
          _
        $region16: #{multi_head_tcdc_self_sg_attention.3} parent=11 // pred_fallthru
          _
        // Predicated region
        $region17: #{multi_head_tcdc_self_sg_attention.3} parent=11 // pred_check
          %p146 = pneg %p81
        $region18: #{multi_head_tcdc_self_sg_attention.3} parent=11 // pred_check_branch
          %148 = sbr.rel (%p146) target = $region20
        $region19: #{multi_head_tcdc_self_sg_attention.3} parent=11 // pred_region
          _
        $region20: #{multi_head_tcdc_self_sg_attention.3} parent=11 // pred_fallthru
          _
        // Predicated region
        $region21: #{multi_head_tcdc_self_sg_attention.3} parent=11 // pred_check
          %p149 = pneg %p102
        $region22: #{multi_head_tcdc_self_sg_attention.3} parent=11 // pred_check_branch
          %151 = sbr.rel (%p149) target = $region24
        $region23: #{multi_head_tcdc_self_sg_attention.3} parent=11 // pred_region
          _
        $region24: #{multi_head_tcdc_self_sg_attention.3} parent=11 // pred_fallthru
          _
      $region12: #{multi_head_tcdc_self_sg_attention.3} parent=5 // pred_fallthru
        _
      %p152 = scmp.lt.s32.totalorder %s13, 2
      // Predicated region
      $region25: #{multi_head_tcdc_self_sg_attention.3} parent=5 // pred_check
        %p153 = pneg %p152
      $region26: #{multi_head_tcdc_self_sg_attention.3} parent=5 // pred_check_branch
        %155 = sbr.rel (%p153) target = $region28
      $region27: #{multi_head_tcdc_self_sg_attention.3} parent=5 // pred_region
        // Predicated region
        $region29: #{multi_head_tcdc_self_sg_attention.3} parent=27 // pred_check
          %p156 = pneg %p33
        $region30: #{multi_head_tcdc_self_sg_attention.3} parent=27 // pred_check_branch
          %158 = sbr.rel (%p156) target = $region32
        $region31: #{multi_head_tcdc_self_sg_attention.3} parent=27 // pred_region
          %p159 = scmp.lt.s32.totalorder %s13, 1
          %s160 = scalar_select %p159, %s13, 1
          %s161 = smul.addr %s160, 4
          %s162 = smul.addr %s161, 8
          %s163 = scalar_lea.vmem %s0, %s162
        $region32: #{multi_head_tcdc_self_sg_attention.3} parent=27 // pred_fallthru
          _
      $region28: #{multi_head_tcdc_self_sg_attention.3} parent=5 // pred_fallthru
        _
      %p164 = scmp.le.s32.totalorder 1, %s13
      %p165 = scmp.lt.s32.totalorder %s13, 3
      %p166 = pnand %p164, %p165
      %p167 = pneg %p166
      // Predicated region
      $region33: #{multi_head_tcdc_self_sg_attention.3} parent=5 // pred_check
        _
      $region34: #{multi_head_tcdc_self_sg_attention.3} parent=5 // pred_check_branch
        %169 = sbr.rel (%p166) target = $region36
      $region35: #{multi_head_tcdc_self_sg_attention.3} parent=5 // pred_region
        %s170 = ssub.s32 %s13, 1
        %p171 = scmp.lt.s32.totalorder %s18, 1
        %s172 = scalar_select %p171, %s18, 1
        %s173 = smul.addr %s172, 4
        %s174 = smul.addr %s173, 8
        %s175 = scalar_lea.vmem %s0, %s174
        %p176 = pneg %p39
        %p177 = pneg %p36
        %p178 = pneg %p60
        %p179 = pneg %p57
        %p180 = pneg %p81
        %p181 = pneg %p78
        %p182 = pneg %p102
        %p183 = pneg %p99
        %p184 = pneg %p128
        %p185 = pneg %p125
        %s186 = sand.u32 %s115, 1
        %s187 = scalar_lea.sflag [#allocation3], %s186
        %s188 = sand.u32 %s115, 1
        %s189 = smul.addr %s188, 32
        %s190 = scalar_lea.vmem [#allocation2], %s189
        %p191 = scmp.lt.s32.totalorder %s18, 1
        %s192 = scalar_select %p191, %s18, 1
        %s193 = smul.addr %s192, 4
        %s194 = smul.addr %s193, 8
        %s195 = scalar_lea.vmem %s0, %s194
        %v197 = vld [vmem:[%s195] sm:$0xff]
        %v198 = vld [vmem:[%s195 + $0x8] sm:$0xff]
        %v199 = vld [vmem:[%s195 + $0x10] sm:$0xff]
        %v200 = vld [vmem:[%s195 + $0x18] sm:$0xff]
        %v201 = vld [vmem:[%s1] sm:$0xf]
        %v202 = vlaneseq
        %v203 = vshrl.u32 %v202, 7
        %v204 = vsub.s32 0, %v203
        %v205 = vrot.slane %v201, %v204
        %v206 = vmul.f32 %v197, %v205
        %v207 = vmul.f32 %v198, %v205
        %v208 = vmul.f32 %v199, %v205
        %v209 = vmul.f32 %v200, %v205
        %v210 = vlaneseq
        %v211 = vshrl.u32 %v210, 7
        %v212 = vsub.s32 1, %v211
        %v213 = vrot.slane %v201, %v212
        %v214 = vadd.f32 %v206, %v213
        %v215 = vadd.f32 %v207, %v213
        %v216 = vadd.f32 %v208, %v213
        %v217 = vadd.f32 %v209, %v213
        %v218 = vpack.c.bf16 %v215, %v214
        %v219 = vpack.c.bf16 %v217, %v216
        %v220 = vlaneseq
        %v221 = vshrl.u32 %v220, 7
        %v222 = vsub.s32 2, %v221
        %v223 = vrot.slane %v201, %v222
        %225 = vrot.lane.b32.xlu0 %v223, 32
        %v226 = vpop.permute.xlu0 %225
        %v228 = vmul.f32 %v197, %v226
        %v229 = vmul.f32 %v198, %v226
        %v230 = vmul.f32 %v199, %v226
        %v231 = vmul.f32 %v200, %v226
        %v232 = vlaneseq
        %v233 = vshrl.u32 %v232, 7
        %v234 = vsub.s32 3, %v233
        %v235 = vrot.slane %v201, %v234
        %237 = vrot.lane.b32.xlu0 %v235, 32
        %v238 = vpop.permute.xlu0 %237
        %v240 = vadd.f32 %v228, %v238
        %v241 = vadd.f32 %v229, %v238
        %v242 = vadd.f32 %v230, %v238
        %v243 = vadd.f32 %v231, %v238
        %v244 = vpack.c.bf16 %v241, %v240
        %v245 = vpack.c.bf16 %v243, %v242
        %v246 = vpack.c.bf16 %v198, %v197
        %v247 = vpack.c.bf16 %v200, %v199
        %250 = vrot.lane.b32.xlu0 %v244, 96
        %v251 = vpop.permute.xlu0 %250
        %252 = vrot.lane.b32.xlu0 %v245, 96
        %v253 = vpop.permute.xlu0 %252
        %vm254 = vcmask 64512
        %v256 = vsel %vm254, %v218, 0
        %v259 = vsel %vm254, %v219, 0
        %v262 = vsel %vm254, %v251, 0
        %v265 = vsel %vm254, %v253, 0
        %267 = vmatprep.subr.bf16.mxu0 0
        %268 = vmatpush1.bf16.xpose.msra.mxu0 %v262
        %269 = vmatprep.subr.bf16.mxu0 0
        %270 = vmatpush1.bf16.xpose.msra.mxu0 %v265
        %271 = vmatprep.subr.bf16.mxu0 0
        %272 = vmatpush1.bf16.xpose.msra.mxu0 0
        %273 = vmatprep.subr.bf16.mxu0 0
        %274 = vmatpush1.bf16.xpose.msra.mxu0 0
        %275 = vmatprep.subr.bf16.mxu0 0
        %276 = vmatpush1.bf16.xpose.msra.mxu0 0
        %277 = vmatprep.subr.bf16.mxu0 0
        %278 = vmatpush1.bf16.xpose.msra.mxu0 0
        %279 = vmatprep.subr.bf16.mxu0 0
        %280 = vmatpush1.bf16.xpose.msra.mxu0 0
        %281 = vmatprep.subr.bf16.mxu0 0
        %282 = vmatpush1.bf16.xpose.msra.mxu0 0
        %283 = vmatprep.subr.bf16.mxu0 0
        %284 = vmatpush1.bf16.xpose.msra.mxu0 0
        %285 = vmatprep.subr.bf16.mxu0 0
        %286 = vmatpush1.bf16.xpose.msra.mxu0 0
        %287 = vmatprep.subr.bf16.mxu0 0
        %288 = vmatpush1.bf16.xpose.msra.mxu0 0
        %289 = vmatprep.subr.bf16.mxu0 0
        %290 = vmatpush1.bf16.xpose.msra.mxu0 0
        %291 = vmatprep.subr.bf16.mxu0 0
        %292 = vmatpush1.bf16.xpose.msra.mxu0 0
        %293 = vmatprep.subr.bf16.mxu0 0
        %294 = vmatpush1.bf16.xpose.msra.mxu0 0
        %295 = vmatprep.subr.bf16.mxu0 0
        %296 = vmatpush1.bf16.xpose.msra.mxu0 0
        %297 = vmatprep.subr.bf16.mxu0 0
        %298 = vmatpush1.bf16.xpose.msra.mxu0 0
        %299 = vmatprep.mubr.bf16.mxu0 0
        %300 = vmatmul.mubr.bf16.gmra.mrb[0].mxu0 %v256
        %v301 = vpop.f32.mrb[0].mxu0
        %v302 = vadd.f32 0.0, %v301
        %v303 = vpop.f32.mrb[0].mxu0
        %v304 = vpop.f32.mrb[0].mxu0
        %v305 = vadd.f32 0.0, %v304
        %v306 = vpop.f32.mrb[0].mxu0
        %307 = vmatprep.mubr.bf16.mxu0 0
        %308 = vmatmul.mubr.bf16.gmra.mrb[0].mxu0 %v259
        %v309 = vpop.f32.mrb[0].mxu0
        %v310 = vadd.f32 0.0, %v309
        %v311 = vpop.f32.mrb[0].mxu0
        %v312 = vpop.f32.mrb[0].mxu0
        %v313 = vadd.f32 0.0, %v312
        %v314 = vpop.f32.mrb[0].mxu0
        %315 = vdwg.mxu0
        %vm316 = vcmask 261120
        %v317 = vsel %vm316, %v302, -inf
        %318 = vmax.xlane.f32.xlu0 %v317
        %v319 = vpop.xlane.xlu0 %318
        %v320 = vsel %vm316, %v305, -inf
        %321 = vmax.xlane.f32.xlu0 %v320
        %v322 = vpop.xlane.xlu0 %321
        %v323 = vsel %vm316, %v310, -inf
        %324 = vmax.xlane.f32.xlu0 %v323
        %v325 = vpop.xlane.xlu0 %324
        %v326 = vsel %vm316, %v313, -inf
        %327 = vmax.xlane.f32.xlu0 %v326
        %v328 = vpop.xlane.xlu0 %327
        %v329 = vsub.f32 %v302, %v319
        %v330 = vsub.f32 %v305, %v322
        %v331 = vsub.f32 %v310, %v325
        %v332 = vsub.f32 %v313, %v328
        %v333 = vmul.f32 %v329, 1.442695
        %v334 = vpow.pop %v333
        %v335 = vmul.f32 %v330, 1.442695
        %v336 = vpow.pop %v335
        %v337 = vmul.f32 %v331, 1.442695
        %v338 = vpow.pop %v337
        %v339 = vmul.f32 %v332, 1.442695
        %v340 = vpow.pop %v339
        %v341 = vsel %vm316, %v334, 0.0
        %342 = vadd.xlane.f32.xlu0 %v341
        %v343 = vpop.xlane.xlu0 %342
        %v344 = vsel %vm316, %v336, 0.0
        %345 = vadd.xlane.f32.xlu0 %v344
        %v346 = vpop.xlane.xlu0 %345
        %v347 = vsel %vm316, %v338, 0.0
        %348 = vadd.xlane.f32.xlu0 %v347
        %v349 = vpop.xlane.xlu0 %348
        %v350 = vsel %vm316, %v340, 0.0
        %351 = vadd.xlane.f32.xlu0 %v350
        %v352 = vpop.xlane.xlu0 %351
        %v353 = vrcp.pop %v343
        %v354 = vrcp.pop %v346
        %v355 = vrcp.pop %v349
        %v356 = vrcp.pop %v352
        %v357 = vmul.f32 %v334, %v353
        %v358 = vmul.f32 %v336, %v354
        %v359 = vmul.f32 %v338, %v355
        %v360 = vmul.f32 %v340, %v356
        %v361 = vpack.c.bf16 %v358, %v357
        %v362 = vpack.c.bf16 %v360, %v359
        %365 = vrot.lane.b32.xlu0 %v246, 64
        %v366 = vpop.permute.xlu0 %365
        %367 = vrot.lane.b32.xlu0 %v247, 64
        %v368 = vpop.permute.xlu0 %367
        %v372 = vsel %vm316, %v361, 0
        %v375 = vsel %vm316, %v362, 0
        %377 = vmatprep.subr.bf16.mxu0 0
        %378 = vmatpush1.bf16.msra.mxu0 %v366
        %379 = vmatprep.subr.bf16.mxu0 0
        %380 = vmatpush1.bf16.msra.mxu0 %v368
        %381 = vmatprep.subr.bf16.mxu0 0
        %382 = vmatpush1.bf16.msra.mxu0 0
        %383 = vmatprep.subr.bf16.mxu0 0
        %384 = vmatpush1.bf16.msra.mxu0 0
        %385 = vmatprep.subr.bf16.mxu0 0
        %386 = vmatpush1.bf16.msra.mxu0 0
        %387 = vmatprep.subr.bf16.mxu0 0
        %388 = vmatpush1.bf16.msra.mxu0 0
        %389 = vmatprep.subr.bf16.mxu0 0
        %390 = vmatpush1.bf16.msra.mxu0 0
        %391 = vmatprep.subr.bf16.mxu0 0
        %392 = vmatpush1.bf16.msra.mxu0 0
        %393 = vmatprep.subr.bf16.mxu0 0
        %394 = vmatpush1.bf16.msra.mxu0 0
        %395 = vmatprep.subr.bf16.mxu0 0
        %396 = vmatpush1.bf16.msra.mxu0 0
        %397 = vmatprep.subr.bf16.mxu0 0
        %398 = vmatpush1.bf16.msra.mxu0 0
        %399 = vmatprep.subr.bf16.mxu0 0
        %400 = vmatpush1.bf16.msra.mxu0 0
        %401 = vmatprep.subr.bf16.mxu0 0
        %402 = vmatpush1.bf16.msra.mxu0 0
        %403 = vmatprep.subr.bf16.mxu0 0
        %404 = vmatpush1.bf16.msra.mxu0 0
        %405 = vmatprep.subr.bf16.mxu0 0
        %406 = vmatpush1.bf16.msra.mxu0 0
        %407 = vmatprep.subr.bf16.mxu0 0
        %408 = vmatpush1.bf16.msra.mxu0 0
        %409 = vmatprep.mubr.bf16.mxu0 0
        %410 = vmatmul.mubr.bf16.gmra.mrb[0].mxu0 %v372
        %v411 = vpop.f32.mrb[0].mxu0
        %v412 = vadd.f32 0.0, %v411
        %v413 = vpop.f32.mrb[0].mxu0
        %v414 = vpop.f32.mrb[0].mxu0
        %v415 = vadd.f32 0.0, %v414
        %v416 = vpop.f32.mrb[0].mxu0
        %417 = vmatprep.mubr.bf16.mxu0 0
        %418 = vmatmul.mubr.bf16.gmra.mrb[0].mxu0 %v375
        %v419 = vpop.f32.mrb[0].mxu0
        %v420 = vadd.f32 0.0, %v419
        %v421 = vpop.f32.mrb[0].mxu0
        %v422 = vpop.f32.mrb[0].mxu0
        %v423 = vadd.f32 0.0, %v422
        %v424 = vpop.f32.mrb[0].mxu0
        %425 = vdwg.mxu0
        %428 = vrot.lane.b32.xlu0 %v218, 120
        %v429 = vpop.permute.xlu0 %428
        %430 = vrot.lane.b32.xlu0 %v219, 120
        %v431 = vpop.permute.xlu0 %430
        %432 = vrot.lane.b32.xlu0 %v244, 88
        %v433 = vpop.permute.xlu0 %432
        %434 = vrot.lane.b32.xlu0 %v245, 88
        %v435 = vpop.permute.xlu0 %434
        %v437 = vsel %vm254, %v429, 0
        %v440 = vsel %vm254, %v431, 0
        %v443 = vsel %vm254, %v433, 0
        %v446 = vsel %vm254, %v435, 0
        %448 = vmatprep.subr.bf16.mxu0 0
        %449 = vmatpush1.bf16.xpose.msra.mxu0 %v443
        %450 = vmatprep.subr.bf16.mxu0 0
        %451 = vmatpush1.bf16.xpose.msra.mxu0 %v446
        %452 = vmatprep.subr.bf16.mxu0 0
        %453 = vmatpush1.bf16.xpose.msra.mxu0 0
        %454 = vmatprep.subr.bf16.mxu0 0
        %455 = vmatpush1.bf16.xpose.msra.mxu0 0
        %456 = vmatprep.subr.bf16.mxu0 0
        %457 = vmatpush1.bf16.xpose.msra.mxu0 0
        %458 = vmatprep.subr.bf16.mxu0 0
        %459 = vmatpush1.bf16.xpose.msra.mxu0 0
        %460 = vmatprep.subr.bf16.mxu0 0
        %461 = vmatpush1.bf16.xpose.msra.mxu0 0
        %462 = vmatprep.subr.bf16.mxu0 0
        %463 = vmatpush1.bf16.xpose.msra.mxu0 0
        %464 = vmatprep.subr.bf16.mxu0 0
        %465 = vmatpush1.bf16.xpose.msra.mxu0 0
        %466 = vmatprep.subr.bf16.mxu0 0
        %467 = vmatpush1.bf16.xpose.msra.mxu0 0
        %468 = vmatprep.subr.bf16.mxu0 0
        %469 = vmatpush1.bf16.xpose.msra.mxu0 0
        %470 = vmatprep.subr.bf16.mxu0 0
        %471 = vmatpush1.bf16.xpose.msra.mxu0 0
        %472 = vmatprep.subr.bf16.mxu0 0
        %473 = vmatpush1.bf16.xpose.msra.mxu0 0
        %474 = vmatprep.subr.bf16.mxu0 0
        %475 = vmatpush1.bf16.xpose.msra.mxu0 0
        %476 = vmatprep.subr.bf16.mxu0 0
        %477 = vmatpush1.bf16.xpose.msra.mxu0 0
        %478 = vmatprep.subr.bf16.mxu0 0
        %479 = vmatpush1.bf16.xpose.msra.mxu0 0
        %480 = vmatprep.mubr.bf16.mxu0 0
        %481 = vmatmul.mubr.bf16.gmra.mrb[0].mxu0 %v437
        %v482 = vpop.f32.mrb[0].mxu0
        %v483 = vadd.f32 0.0, %v482
        %v484 = vpop.f32.mrb[0].mxu0
        %v485 = vpop.f32.mrb[0].mxu0
        %v486 = vadd.f32 0.0, %v485
        %v487 = vpop.f32.mrb[0].mxu0
        %488 = vmatprep.mubr.bf16.mxu0 0
        %489 = vmatmul.mubr.bf16.gmra.mrb[0].mxu0 %v440
        %v490 = vpop.f32.mrb[0].mxu0
        %v491 = vadd.f32 0.0, %v490
        %v492 = vpop.f32.mrb[0].mxu0
        %v493 = vpop.f32.mrb[0].mxu0
        %v494 = vadd.f32 0.0, %v493
        %v495 = vpop.f32.mrb[0].mxu0
        %496 = vdwg.mxu0
        %v497 = vsel %vm316, %v483, -inf
        %498 = vmax.xlane.f32.xlu0 %v497
        %v499 = vpop.xlane.xlu0 %498
        %v500 = vsel %vm316, %v486, -inf
        %501 = vmax.xlane.f32.xlu0 %v500
        %v502 = vpop.xlane.xlu0 %501
        %v503 = vsel %vm316, %v491, -inf
        %504 = vmax.xlane.f32.xlu0 %v503
        %v505 = vpop.xlane.xlu0 %504
        %v506 = vsel %vm316, %v494, -inf
        %507 = vmax.xlane.f32.xlu0 %v506
        %v508 = vpop.xlane.xlu0 %507
        %v509 = vsub.f32 %v483, %v499
        %v510 = vsub.f32 %v486, %v502
        %v511 = vsub.f32 %v491, %v505
        %v512 = vsub.f32 %v494, %v508
        %v513 = vmul.f32 %v509, 1.442695
        %v514 = vpow.pop %v513
        %v515 = vmul.f32 %v510, 1.442695
        %v516 = vpow.pop %v515
        %v517 = vmul.f32 %v511, 1.442695
        %v518 = vpow.pop %v517
        %v519 = vmul.f32 %v512, 1.442695
        %v520 = vpow.pop %v519
        %v521 = vsel %vm316, %v514, 0.0
        %522 = vadd.xlane.f32.xlu0 %v521
        %v523 = vpop.xlane.xlu0 %522
        %v524 = vsel %vm316, %v516, 0.0
        %525 = vadd.xlane.f32.xlu0 %v524
        %v526 = vpop.xlane.xlu0 %525
        %v527 = vsel %vm316, %v518, 0.0
        %528 = vadd.xlane.f32.xlu0 %v527
        %v529 = vpop.xlane.xlu0 %528
        %v530 = vsel %vm316, %v520, 0.0
        %531 = vadd.xlane.f32.xlu0 %v530
        %v532 = vpop.xlane.xlu0 %531
        %v533 = vrcp.pop %v523
        %v534 = vrcp.pop %v526
        %v535 = vrcp.pop %v529
        %v536 = vrcp.pop %v532
        %v537 = vmul.f32 %v514, %v533
        %v538 = vmul.f32 %v516, %v534
        %v539 = vmul.f32 %v518, %v535
        %v540 = vmul.f32 %v520, %v536
        %v541 = vpack.c.bf16 %v538, %v537
        %v542 = vpack.c.bf16 %v540, %v539
        %543 = vrot.lane.b32.xlu0 %v246, 56
        %v544 = vpop.permute.xlu0 %543
        %545 = vrot.lane.b32.xlu0 %v247, 56
        %v546 = vpop.permute.xlu0 %545
        %v550 = vsel %vm316, %v541, 0
        %v553 = vsel %vm316, %v542, 0
        %555 = vmatprep.subr.bf16.mxu0 0
        %556 = vmatpush1.bf16.msra.mxu0 %v544
        %557 = vmatprep.subr.bf16.mxu0 0
        %558 = vmatpush1.bf16.msra.mxu0 %v546
        %559 = vmatprep.subr.bf16.mxu0 0
        %560 = vmatpush1.bf16.msra.mxu0 0
        %561 = vmatprep.subr.bf16.mxu0 0
        %562 = vmatpush1.bf16.msra.mxu0 0
        %563 = vmatprep.subr.bf16.mxu0 0
        %564 = vmatpush1.bf16.msra.mxu0 0
        %565 = vmatprep.subr.bf16.mxu0 0
        %566 = vmatpush1.bf16.msra.mxu0 0
        %567 = vmatprep.subr.bf16.mxu0 0
        %568 = vmatpush1.bf16.msra.mxu0 0
        %569 = vmatprep.subr.bf16.mxu0 0
        %570 = vmatpush1.bf16.msra.mxu0 0
        %571 = vmatprep.subr.bf16.mxu0 0
        %572 = vmatpush1.bf16.msra.mxu0 0
        %573 = vmatprep.subr.bf16.mxu0 0
        %574 = vmatpush1.bf16.msra.mxu0 0
        %575 = vmatprep.subr.bf16.mxu0 0
        %576 = vmatpush1.bf16.msra.mxu0 0
        %577 = vmatprep.subr.bf16.mxu0 0
        %578 = vmatpush1.bf16.msra.mxu0 0
        %579 = vmatprep.subr.bf16.mxu0 0
        %580 = vmatpush1.bf16.msra.mxu0 0
        %581 = vmatprep.subr.bf16.mxu0 0
        %582 = vmatpush1.bf16.msra.mxu0 0
        %583 = vmatprep.subr.bf16.mxu0 0
        %584 = vmatpush1.bf16.msra.mxu0 0
        %585 = vmatprep.subr.bf16.mxu0 0
        %586 = vmatpush1.bf16.msra.mxu0 0
        %587 = vmatprep.mubr.bf16.mxu0 0
        %588 = vmatmul.mubr.bf16.gmra.mrb[0].mxu0 %v550
        %v589 = vpop.f32.mrb[0].mxu0
        %v590 = vadd.f32 0.0, %v589
        %v591 = vpop.f32.mrb[0].mxu0
        %v592 = vpop.f32.mrb[0].mxu0
        %v593 = vadd.f32 0.0, %v592
        %v594 = vpop.f32.mrb[0].mxu0
        %595 = vmatprep.mubr.bf16.mxu0 0
        %596 = vmatmul.mubr.bf16.gmra.mrb[0].mxu0 %v553
        %v597 = vpop.f32.mrb[0].mxu0
        %v598 = vadd.f32 0.0, %v597
        %v599 = vpop.f32.mrb[0].mxu0
        %v600 = vpop.f32.mrb[0].mxu0
        %v601 = vadd.f32 0.0, %v600
        %v602 = vpop.f32.mrb[0].mxu0
        %603 = vdwg.mxu0
        %604 = vrot.lane.b32.xlu0 %v218, 112
        %v605 = vpop.permute.xlu0 %604
        %606 = vrot.lane.b32.xlu0 %v219, 112
        %v607 = vpop.permute.xlu0 %606
        %608 = vrot.lane.b32.xlu0 %v244, 80
        %v609 = vpop.permute.xlu0 %608
        %610 = vrot.lane.b32.xlu0 %v245, 80
        %v611 = vpop.permute.xlu0 %610
        %v613 = vsel %vm254, %v605, 0
        %v616 = vsel %vm254, %v607, 0
        %v619 = vsel %vm254, %v609, 0
        %v622 = vsel %vm254, %v611, 0
        %624 = vmatprep.subr.bf16.mxu0 0
        %625 = vmatpush1.bf16.xpose.msra.mxu0 %v619
        %626 = vmatprep.subr.bf16.mxu0 0
        %627 = vmatpush1.bf16.xpose.msra.mxu0 %v622
        %628 = vmatprep.subr.bf16.mxu0 0
        %629 = vmatpush1.bf16.xpose.msra.mxu0 0
        %630 = vmatprep.subr.bf16.mxu0 0
        %631 = vmatpush1.bf16.xpose.msra.mxu0 0
        %632 = vmatprep.subr.bf16.mxu0 0
        %633 = vmatpush1.bf16.xpose.msra.mxu0 0
        %634 = vmatprep.subr.bf16.mxu0 0
        %635 = vmatpush1.bf16.xpose.msra.mxu0 0
        %636 = vmatprep.subr.bf16.mxu0 0
        %637 = vmatpush1.bf16.xpose.msra.mxu0 0
        %638 = vmatprep.subr.bf16.mxu0 0
        %639 = vmatpush1.bf16.xpose.msra.mxu0 0
        %640 = vmatprep.subr.bf16.mxu0 0
        %641 = vmatpush1.bf16.xpose.msra.mxu0 0
        %642 = vmatprep.subr.bf16.mxu0 0
        %643 = vmatpush1.bf16.xpose.msra.mxu0 0
        %644 = vmatprep.subr.bf16.mxu0 0
        %645 = vmatpush1.bf16.xpose.msra.mxu0 0
        %646 = vmatprep.subr.bf16.mxu0 0
        %647 = vmatpush1.bf16.xpose.msra.mxu0 0
        %648 = vmatprep.subr.bf16.mxu0 0
        %649 = vmatpush1.bf16.xpose.msra.mxu0 0
        %650 = vmatprep.subr.bf16.mxu0 0
        %651 = vmatpush1.bf16.xpose.msra.mxu0 0
        %652 = vmatprep.subr.bf16.mxu0 0
        %653 = vmatpush1.bf16.xpose.msra.mxu0 0
        %654 = vmatprep.subr.bf16.mxu0 0
        %655 = vmatpush1.bf16.xpose.msra.mxu0 0
        %656 = vmatprep.mubr.bf16.mxu0 0
        %657 = vmatmul.mubr.bf16.gmra.mrb[0].mxu0 %v613
        %v658 = vpop.f32.mrb[0].mxu0
        %v659 = vadd.f32 0.0, %v658
        %v660 = vpop.f32.mrb[0].mxu0
        %v661 = vpop.f32.mrb[0].mxu0
        %v662 = vadd.f32 0.0, %v661
        %v663 = vpop.f32.mrb[0].mxu0
        %664 = vmatprep.mubr.bf16.mxu0 0
        %665 = vmatmul.mubr.bf16.gmra.mrb[0].mxu0 %v616
        %v666 = vpop.f32.mrb[0].mxu0
        %v667 = vadd.f32 0.0, %v666
        %v668 = vpop.f32.mrb[0].mxu0
        %v669 = vpop.f32.mrb[0].mxu0
        %v670 = vadd.f32 0.0, %v669
        %v671 = vpop.f32.mrb[0].mxu0
        %672 = vdwg.mxu0
        %v673 = vsel %vm316, %v659, -inf
        %674 = vmax.xlane.f32.xlu0 %v673
        %v675 = vpop.xlane.xlu0 %674
        %v676 = vsel %vm316, %v662, -inf
        %677 = vmax.xlane.f32.xlu0 %v676
        %v678 = vpop.xlane.xlu0 %677
        %v679 = vsel %vm316, %v667, -inf
        %680 = vmax.xlane.f32.xlu0 %v679
        %v681 = vpop.xlane.xlu0 %680
        %v682 = vsel %vm316, %v670, -inf
        %683 = vmax.xlane.f32.xlu0 %v682
        %v684 = vpop.xlane.xlu0 %683
        %v685 = vsub.f32 %v659, %v675
        %v686 = vsub.f32 %v662, %v678
        %v687 = vsub.f32 %v667, %v681
        %v688 = vsub.f32 %v670, %v684
        %v689 = vmul.f32 %v685, 1.442695
        %v690 = vpow.pop %v689
        %v691 = vmul.f32 %v686, 1.442695
        %v692 = vpow.pop %v691
        %v693 = vmul.f32 %v687, 1.442695
        %v694 = vpow.pop %v693
        %v695 = vmul.f32 %v688, 1.442695
        %v696 = vpow.pop %v695
        %v697 = vsel %vm316, %v690, 0.0
        %698 = vadd.xlane.f32.xlu0 %v697
        %v699 = vpop.xlane.xlu0 %698
        %v700 = vsel %vm316, %v692, 0.0
        %701 = vadd.xlane.f32.xlu0 %v700
        %v702 = vpop.xlane.xlu0 %701
        %v703 = vsel %vm316, %v694, 0.0
        %704 = vadd.xlane.f32.xlu0 %v703
        %v705 = vpop.xlane.xlu0 %704
        %v706 = vsel %vm316, %v696, 0.0
        %707 = vadd.xlane.f32.xlu0 %v706
        %v708 = vpop.xlane.xlu0 %707
        %v709 = vrcp.pop %v699
        %v710 = vrcp.pop %v702
        %v711 = vrcp.pop %v705
        %v712 = vrcp.pop %v708
        %v713 = vmul.f32 %v690, %v709
        %v714 = vmul.f32 %v692, %v710
        %v715 = vmul.f32 %v694, %v711
        %v716 = vmul.f32 %v696, %v712
        %v717 = vpack.c.bf16 %v714, %v713
        %v718 = vpack.c.bf16 %v716, %v715
        %719 = vrot.lane.b32.xlu0 %v246, 48
        %v720 = vpop.permute.xlu0 %719
        %721 = vrot.lane.b32.xlu0 %v247, 48
        %v722 = vpop.permute.xlu0 %721
        %v726 = vsel %vm316, %v717, 0
        %v729 = vsel %vm316, %v718, 0
        %731 = vmatprep.subr.bf16.mxu0 0
        %732 = vmatpush1.bf16.msra.mxu0 %v720
        %733 = vmatprep.subr.bf16.mxu0 0
        %734 = vmatpush1.bf16.msra.mxu0 %v722
        %735 = vmatprep.subr.bf16.mxu0 0
        %736 = vmatpush1.bf16.msra.mxu0 0
        %737 = vmatprep.subr.bf16.mxu0 0
        %738 = vmatpush1.bf16.msra.mxu0 0
        %739 = vmatprep.subr.bf16.mxu0 0
        %740 = vmatpush1.bf16.msra.mxu0 0
        %741 = vmatprep.subr.bf16.mxu0 0
        %742 = vmatpush1.bf16.msra.mxu0 0
        %743 = vmatprep.subr.bf16.mxu0 0
        %744 = vmatpush1.bf16.msra.mxu0 0
        %745 = vmatprep.subr.bf16.mxu0 0
        %746 = vmatpush1.bf16.msra.mxu0 0
        %747 = vmatprep.subr.bf16.mxu0 0
        %748 = vmatpush1.bf16.msra.mxu0 0
        %749 = vmatprep.subr.bf16.mxu0 0
        %750 = vmatpush1.bf16.msra.mxu0 0
        %751 = vmatprep.subr.bf16.mxu0 0
        %752 = vmatpush1.bf16.msra.mxu0 0
        %753 = vmatprep.subr.bf16.mxu0 0
        %754 = vmatpush1.bf16.msra.mxu0 0
        %755 = vmatprep.subr.bf16.mxu0 0
        %756 = vmatpush1.bf16.msra.mxu0 0
        %757 = vmatprep.subr.bf16.mxu0 0
        %758 = vmatpush1.bf16.msra.mxu0 0
        %759 = vmatprep.subr.bf16.mxu0 0
        %760 = vmatpush1.bf16.msra.mxu0 0
        %761 = vmatprep.subr.bf16.mxu0 0
        %762 = vmatpush1.bf16.msra.mxu0 0
        %763 = vmatprep.mubr.bf16.mxu0 0
        %764 = vmatmul.mubr.bf16.gmra.mrb[0].mxu0 %v726
        %v765 = vpop.f32.mrb[0].mxu0
        %v766 = vadd.f32 0.0, %v765
        %v767 = vpop.f32.mrb[0].mxu0
        %v768 = vpop.f32.mrb[0].mxu0
        %v769 = vadd.f32 0.0, %v768
        %v770 = vpop.f32.mrb[0].mxu0
        %771 = vmatprep.mubr.bf16.mxu0 0
        %772 = vmatmul.mubr.bf16.gmra.mrb[0].mxu0 %v729
        %v773 = vpop.f32.mrb[0].mxu0
        %v774 = vadd.f32 0.0, %v773
        %v775 = vpop.f32.mrb[0].mxu0
        %v776 = vpop.f32.mrb[0].mxu0
        %v777 = vadd.f32 0.0, %v776
        %v778 = vpop.f32.mrb[0].mxu0
        %779 = vdwg.mxu0
        %780 = vrot.lane.b32.xlu0 %v218, 104
        %v781 = vpop.permute.xlu0 %780
        %782 = vrot.lane.b32.xlu0 %v219, 104
        %v783 = vpop.permute.xlu0 %782
        %784 = vrot.lane.b32.xlu0 %v244, 72
        %v785 = vpop.permute.xlu0 %784
        %786 = vrot.lane.b32.xlu0 %v245, 72
        %v787 = vpop.permute.xlu0 %786
        %v789 = vsel %vm254, %v781, 0
        %v792 = vsel %vm254, %v783, 0
        %v795 = vsel %vm254, %v785, 0
        %v798 = vsel %vm254, %v787, 0
        %800 = vmatprep.subr.bf16.mxu0 0
        %801 = vmatpush1.bf16.xpose.msra.mxu0 %v795
        %802 = vmatprep.subr.bf16.mxu0 0
        %803 = vmatpush1.bf16.xpose.msra.mxu0 %v798
        %804 = vmatprep.subr.bf16.mxu0 0
        %805 = vmatpush1.bf16.xpose.msra.mxu0 0
        %806 = vmatprep.subr.bf16.mxu0 0
        %807 = vmatpush1.bf16.xpose.msra.mxu0 0
        %808 = vmatprep.subr.bf16.mxu0 0
        %809 = vmatpush1.bf16.xpose.msra.mxu0 0
        %810 = vmatprep.subr.bf16.mxu0 0
        %811 = vmatpush1.bf16.xpose.msra.mxu0 0
        %812 = vmatprep.subr.bf16.mxu0 0
        %813 = vmatpush1.bf16.xpose.msra.mxu0 0
        %814 = vmatprep.subr.bf16.mxu0 0
        %815 = vmatpush1.bf16.xpose.msra.mxu0 0
        %816 = vmatprep.subr.bf16.mxu0 0
        %817 = vmatpush1.bf16.xpose.msra.mxu0 0
        %818 = vmatprep.subr.bf16.mxu0 0
        %819 = vmatpush1.bf16.xpose.msra.mxu0 0
        %820 = vmatprep.subr.bf16.mxu0 0
        %821 = vmatpush1.bf16.xpose.msra.mxu0 0
        %822 = vmatprep.subr.bf16.mxu0 0
        %823 = vmatpush1.bf16.xpose.msra.mxu0 0
        %824 = vmatprep.subr.bf16.mxu0 0
        %825 = vmatpush1.bf16.xpose.msra.mxu0 0
        %826 = vmatprep.subr.bf16.mxu0 0
        %827 = vmatpush1.bf16.xpose.msra.mxu0 0
        %828 = vmatprep.subr.bf16.mxu0 0
        %829 = vmatpush1.bf16.xpose.msra.mxu0 0
        %830 = vmatprep.subr.bf16.mxu0 0
        %831 = vmatpush1.bf16.xpose.msra.mxu0 0
        %832 = vmatprep.mubr.bf16.mxu0 0
        %833 = vmatmul.mubr.bf16.gmra.mrb[0].mxu0 %v789
        %v834 = vpop.f32.mrb[0].mxu0
        %v835 = vadd.f32 0.0, %v834
        %v836 = vpop.f32.mrb[0].mxu0
        %v837 = vpop.f32.mrb[0].mxu0
        %v838 = vadd.f32 0.0, %v837
        %v839 = vpop.f32.mrb[0].mxu0
        %840 = vmatprep.mubr.bf16.mxu0 0
        %841 = vmatmul.mubr.bf16.gmra.mrb[0].mxu0 %v792
        %v842 = vpop.f32.mrb[0].mxu0
        %v843 = vadd.f32 0.0, %v842
        %v844 = vpop.f32.mrb[0].mxu0
        %v845 = vpop.f32.mrb[0].mxu0
        %v846 = vadd.f32 0.0, %v845
        %v847 = vpop.f32.mrb[0].mxu0
        %848 = vdwg.mxu0
        %v849 = vsel %vm316, %v835, -inf
        %850 = vmax.xlane.f32.xlu0 %v849
        %v851 = vpop.xlane.xlu0 %850
        %v852 = vsel %vm316, %v838, -inf
        %853 = vmax.xlane.f32.xlu0 %v852
        %v854 = vpop.xlane.xlu0 %853
        %v855 = vsel %vm316, %v843, -inf
        %856 = vmax.xlane.f32.xlu0 %v855
        %v857 = vpop.xlane.xlu0 %856
        %v858 = vsel %vm316, %v846, -inf
        %859 = vmax.xlane.f32.xlu0 %v858
        %v860 = vpop.xlane.xlu0 %859
        %v861 = vsub.f32 %v835, %v851
        %v862 = vsub.f32 %v838, %v854
        %v863 = vsub.f32 %v843, %v857
        %v864 = vsub.f32 %v846, %v860
        %v865 = vmul.f32 %v861, 1.442695
        %v866 = vpow.pop %v865
        %v867 = vmul.f32 %v862, 1.442695
        %v868 = vpow.pop %v867
        %v869 = vmul.f32 %v863, 1.442695
        %v870 = vpow.pop %v869
        %v871 = vmul.f32 %v864, 1.442695
        %v872 = vpow.pop %v871
        %v873 = vsel %vm316, %v866, 0.0
        %874 = vadd.xlane.f32.xlu0 %v873
        %v875 = vpop.xlane.xlu0 %874
        %v876 = vsel %vm316, %v868, 0.0
        %877 = vadd.xlane.f32.xlu0 %v876
        %v878 = vpop.xlane.xlu0 %877
        %v879 = vsel %vm316, %v870, 0.0
        %880 = vadd.xlane.f32.xlu0 %v879
        %v881 = vpop.xlane.xlu0 %880
        %v882 = vsel %vm316, %v872, 0.0
        %883 = vadd.xlane.f32.xlu0 %v882
        %v884 = vpop.xlane.xlu0 %883
        %v885 = vrcp.pop %v875
        %v886 = vrcp.pop %v878
        %v887 = vrcp.pop %v881
        %v888 = vrcp.pop %v884
        %v889 = vmul.f32 %v866, %v885
        %v890 = vmul.f32 %v868, %v886
        %v891 = vmul.f32 %v870, %v887
        %v892 = vmul.f32 %v872, %v888
        %v893 = vpack.c.bf16 %v890, %v889
        %v894 = vpack.c.bf16 %v892, %v891
        %895 = vrot.lane.b32.xlu0 %v246, 40
        %v896 = vpop.permute.xlu0 %895
        %897 = vrot.lane.b32.xlu0 %v247, 40
        %v898 = vpop.permute.xlu0 %897
        %v902 = vsel %vm316, %v893, 0
        %v905 = vsel %vm316, %v894, 0
        %907 = vmatprep.subr.bf16.mxu0 0
        %908 = vmatpush1.bf16.msra.mxu0 %v896
        %909 = vmatprep.subr.bf16.mxu0 0
        %910 = vmatpush1.bf16.msra.mxu0 %v898
        %911 = vmatprep.subr.bf16.mxu0 0
        %912 = vmatpush1.bf16.msra.mxu0 0
        %913 = vmatprep.subr.bf16.mxu0 0
        %914 = vmatpush1.bf16.msra.mxu0 0
        %915 = vmatprep.subr.bf16.mxu0 0
        %916 = vmatpush1.bf16.msra.mxu0 0
        %917 = vmatprep.subr.bf16.mxu0 0
        %918 = vmatpush1.bf16.msra.mxu0 0
        %919 = vmatprep.subr.bf16.mxu0 0
        %920 = vmatpush1.bf16.msra.mxu0 0
        %921 = vmatprep.subr.bf16.mxu0 0
        %922 = vmatpush1.bf16.msra.mxu0 0
        %923 = vmatprep.subr.bf16.mxu0 0
        %924 = vmatpush1.bf16.msra.mxu0 0
        %925 = vmatprep.subr.bf16.mxu0 0
        %926 = vmatpush1.bf16.msra.mxu0 0
        %927 = vmatprep.subr.bf16.mxu0 0
        %928 = vmatpush1.bf16.msra.mxu0 0
        %929 = vmatprep.subr.bf16.mxu0 0
        %930 = vmatpush1.bf16.msra.mxu0 0
        %931 = vmatprep.subr.bf16.mxu0 0
        %932 = vmatpush1.bf16.msra.mxu0 0
        %933 = vmatprep.subr.bf16.mxu0 0
        %934 = vmatpush1.bf16.msra.mxu0 0
        %935 = vmatprep.subr.bf16.mxu0 0
        %936 = vmatpush1.bf16.msra.mxu0 0
        %937 = vmatprep.subr.bf16.mxu0 0
        %938 = vmatpush1.bf16.msra.mxu0 0
        %939 = vmatprep.mubr.bf16.mxu0 0
        %940 = vmatmul.mubr.bf16.gmra.mrb[0].mxu0 %v902
        %v941 = vpop.f32.mrb[0].mxu0
        %v942 = vadd.f32 0.0, %v941
        %v943 = vpop.f32.mrb[0].mxu0
        %v944 = vpop.f32.mrb[0].mxu0
        %v945 = vadd.f32 0.0, %v944
        %v946 = vpop.f32.mrb[0].mxu0
        %947 = vmatprep.mubr.bf16.mxu0 0
        %948 = vmatmul.mubr.bf16.gmra.mrb[0].mxu0 %v905
        %v949 = vpop.f32.mrb[0].mxu0
        %v950 = vadd.f32 0.0, %v949
        %v951 = vpop.f32.mrb[0].mxu0
        %v952 = vpop.f32.mrb[0].mxu0
        %v953 = vadd.f32 0.0, %v952
        %v954 = vpop.f32.mrb[0].mxu0
        %955 = vdwg.mxu0
        %960 = vrot.lane.b32.xlu0 %v590, 8
        %v961 = vpop.permute.xlu0 %960
        %962 = vrot.lane.b32.xlu0 %v593, 8
        %v963 = vpop.permute.xlu0 %962
        %964 = vrot.lane.b32.xlu0 %v598, 8
        %v965 = vpop.permute.xlu0 %964
        %966 = vrot.lane.b32.xlu0 %v601, 8
        %v967 = vpop.permute.xlu0 %966
        %976 = vrot.lane.b32.xlu0 %v766, 16
        %v977 = vpop.permute.xlu0 %976
        %978 = vrot.lane.b32.xlu0 %v769, 16
        %v979 = vpop.permute.xlu0 %978
        %980 = vrot.lane.b32.xlu0 %v774, 16
        %v981 = vpop.permute.xlu0 %980
        %982 = vrot.lane.b32.xlu0 %v777, 16
        %v983 = vpop.permute.xlu0 %982
        %992 = vrot.lane.b32.xlu0 %v942, 24
        %v993 = vpop.permute.xlu0 %992
        %994 = vrot.lane.b32.xlu0 %v945, 24
        %v995 = vpop.permute.xlu0 %994
        %996 = vrot.lane.b32.xlu0 %v950, 24
        %v997 = vpop.permute.xlu0 %996
        %998 = vrot.lane.b32.xlu0 %v953, 24
        %v999 = vpop.permute.xlu0 %998
        %v1004 = vsel %vm254, %v412, %v961
        %v1005 = vsel %vm254, %v415, %v963
        %v1006 = vsel %vm254, %v420, %v965
        %v1007 = vsel %vm254, %v423, %v967
        %vm1008 = vcmask 130048
        %v1009 = vsel %vm1008, %v1004, %v977
        %v1010 = vsel %vm1008, %v1005, %v979
        %v1011 = vsel %vm1008, %v1006, %v981
        %v1012 = vsel %vm1008, %v1007, %v983
        %vm1013 = vcmask 195584
        %v1014 = vsel %vm1013, %v1009, %v993
        %v1015 = vsel %vm1013, %v1010, %v995
        %v1016 = vsel %vm1013, %v1011, %v997
        %v1017 = vsel %vm1013, %v1012, %v999
        %v1018 = vpack.c.bf16 %v1015, %v1014
        %v1019 = vpack.c.bf16 %v1017, %v1016
        %v1020 = vld [vmem:[%s2] sm:$0xf]
        %v1021 = vld [vmem:[%s2 + $0x4] sm:$0xf]
        %v1022 = vld [vmem:[%s2 + $0x8] sm:$0xf]
        %v1023 = vld [vmem:[%s2 + $0xc] sm:$0xf]
        %v1024 = vld [vmem:[%s3] sm:$0x1]
        %v1026 = vlaneseq
        %v1027 = vshrl.u32 %v1026, 7
        %v1028 = vsub.s32 0, %v1027
        %v1029 = vrot.slane %v1024, %v1028
        %v1035 = vunpack.c.l.b16 %v1020
        %v1036 = vunpack.c.l.b16 %v1021
        %v1037 = vunpack.c.l.b16 %v1022
        %v1038 = vunpack.c.l.b16 %v1023
        %v1039 = vpack.c.b16 %v1036, %v1035
        %v1040 = vpack.c.b16 %v1038, %v1037
        %v1044 = vsel %vm316, %v1018, 0
        %v1047 = vsel %vm316, %v1019, 0
        %1049 = vmatprep.subr.bf16.mxu0 0
        %1050 = vmatpush1.bf16.msra.mxu0 %v1039
        %1051 = vmatprep.subr.bf16.mxu0 0
        %1052 = vmatpush1.bf16.msra.mxu0 %v1040
        %1053 = vmatprep.subr.bf16.mxu0 0
        %1054 = vmatpush1.bf16.msra.mxu0 0
        %1055 = vmatprep.subr.bf16.mxu0 0
        %1056 = vmatpush1.bf16.msra.mxu0 0
        %1057 = vmatprep.subr.bf16.mxu0 0
        %1058 = vmatpush1.bf16.msra.mxu0 0
        %1059 = vmatprep.subr.bf16.mxu0 0
        %1060 = vmatpush1.bf16.msra.mxu0 0
        %1061 = vmatprep.subr.bf16.mxu0 0
        %1062 = vmatpush1.bf16.msra.mxu0 0
        %1063 = vmatprep.subr.bf16.mxu0 0
        %1064 = vmatpush1.bf16.msra.mxu0 0
        %1065 = vmatprep.subr.bf16.mxu0 0
        %1066 = vmatpush1.bf16.msra.mxu0 0
        %1067 = vmatprep.subr.bf16.mxu0 0
        %1068 = vmatpush1.bf16.msra.mxu0 0
        %1069 = vmatprep.subr.bf16.mxu0 0
        %1070 = vmatpush1.bf16.msra.mxu0 0
        %1071 = vmatprep.subr.bf16.mxu0 0
        %1072 = vmatpush1.bf16.msra.mxu0 0
        %1073 = vmatprep.subr.bf16.mxu0 0
        %1074 = vmatpush1.bf16.msra.mxu0 0
        %1075 = vmatprep.subr.bf16.mxu0 0
        %1076 = vmatpush1.bf16.msra.mxu0 0
        %1077 = vmatprep.subr.bf16.mxu0 0
        %1078 = vmatpush1.bf16.msra.mxu0 0
        %1079 = vmatprep.subr.bf16.mxu0 0
        %1080 = vmatpush1.bf16.msra.mxu0 0
        %1081 = vmatprep.mubr.bf16.mxu0 0
        %1082 = vmatmul.mubr.bf16.gmra.mrb[0].mxu0 %v1044
        %v1083 = vpop.f32.mrb[0].mxu0
        %v1084 = vadd.f32 %v1029, %v1083
        %v1085 = vpop.f32.mrb[0].mxu0
        %v1086 = vpop.f32.mrb[0].mxu0
        %v1087 = vadd.f32 %v1029, %v1086
        %v1088 = vpop.f32.mrb[0].mxu0
        %1089 = vmatprep.mubr.bf16.mxu0 0
        %1090 = vmatmul.mubr.bf16.gmra.mrb[0].mxu0 %v1047
        %v1091 = vpop.f32.mrb[0].mxu0
        %v1092 = vadd.f32 %v1029, %v1091
        %v1093 = vpop.f32.mrb[0].mxu0
        %v1094 = vpop.f32.mrb[0].mxu0
        %v1095 = vadd.f32 %v1029, %v1094
        %v1096 = vpop.f32.mrb[0].mxu0
        %1097 = vdwg.mxu0
        %1098 = vst.msk [vmem:[%s190] sm:$0xff] %vm316, %v1084
        %1099 = vst.msk [vmem:[%s190 + $0x8] sm:$0xff] %vm316, %v1087
        %1100 = vst.msk [vmem:[%s190 + $0x10] sm:$0xff] %vm316, %v1092
        %1101 = vst.msk [vmem:[%s190 + $0x18] sm:$0xff] %vm316, %v1095
        %s1102 = sand.u32 %s115, 1
        %s1103 = scalar_lea.sflag [#allocation3], %s1102
        %s1104 = sand.u32 %s115, 1
        %s1105 = smul.addr %s1104, 32
        %s1106 = scalar_lea.vmem [#allocation2], %s1105
        // Predicated region
        $region37: #{multi_head_tcdc_self_sg_attention.3} parent=35 // pred_check
          %p1107 = pneg %p125
        $region38: #{multi_head_tcdc_self_sg_attention.3} parent=35 // pred_check_branch
          %1109 = sbr.rel (%p1107) target = $region40
        $region39: #{multi_head_tcdc_self_sg_attention.3} parent=35 // pred_region
          %s1111 = ssub.s32 512, 512
          %1112 = vsyncadd %s1103, %s1111
          %s1113 = smul.addr %s18, 4
          %s1114 = smul.addr %s1113, 128
          %s1115 = scalar_lea.hbm %s4, %s1114
          %s1116 = sshll.u32 %s1106, 4
          %s1117 = int_to_ptr.vmem [resolvable:$true] %s1116
          %1122 = dma.vmem_to_hbm [thread:$0]  %s1117, 512, %s1115, %s1103, 128, 128, 8
        $region40: #{multi_head_tcdc_self_sg_attention.3} parent=35 // pred_fallthru
          _
      $region36: #{multi_head_tcdc_self_sg_attention.3} parent=5 // pred_fallthru
        _
      %p1123 = scmp.le.s32.totalorder 2, %s13
      // Predicated region
      $region41: #{multi_head_tcdc_self_sg_attention.3} parent=5 // pred_check
        %p1124 = pneg %p1123
      $region42: #{multi_head_tcdc_self_sg_attention.3} parent=5 // pred_check_branch
        %1126 = sbr.rel (%p1124) target = $region44
      $region43: #{multi_head_tcdc_self_sg_attention.3} parent=5 // pred_region
        %s1127 = ssub.s32 %s13, 2
        // Predicated region
        $region45: #{multi_head_tcdc_self_sg_attention.3} parent=43 // pred_check
          %p1128 = pneg %p131
        $region46: #{multi_head_tcdc_self_sg_attention.3} parent=43 // pred_check_branch
          %1130 = sbr.rel (%p1128) target = $region48
        $region47: #{multi_head_tcdc_self_sg_attention.3} parent=43 // pred_region
          %s1131 = sand.u32 %s116, 1
          %s1132 = scalar_lea.sflag [#allocation3], %s1131
          %s1133 = sand.u32 %s116, 1
          %s1134 = smul.addr %s1133, 32
          %s1135 = scalar_lea.vmem [#allocation2], %s1134
          %1136 = dma.done %s1132, 512
        $region48: #{multi_head_tcdc_self_sg_attention.3} parent=43 // pred_fallthru
          _
      $region44: #{multi_head_tcdc_self_sg_attention.3} parent=5 // pred_fallthru
        _
    $region6: #{multi_head_tcdc_self_sg_attention.3} parent=1 // loop_footer
      %s17 = sadd.s32 1, %s13
    $region7: #{multi_head_tcdc_self_sg_attention.3} parent=1 // loop_footer_branch
      %12 = sbr.rel target = $region3
    $region8: #{multi_head_tcdc_self_sg_attention.3} parent=1 // loop_exit
      _
    %1137 = vsyncpa [#allocation3], 1
    %s1138 = scalar_lea.sflag [#allocation3], 1
    %1139 = vsyncpa %s1138, 1

</llo_original>
